<compile_context>
chip_gen: v6e
topology: v6e:2x2x1
jax: 0.10.0
libtpu: 0.0.40
codegen_flags: <defaults>
</compile_context>

<pallas_src>
import math

import jax
import jax.numpy as jnp
from jax.experimental import pallas as pl
from jax.experimental.pallas import tpu as pltpu

# ----------------------------- small synthetic config -----------------------
B, S = 2, 8          # batch, sequence
H = 32               # hidden size          (real XLM: 1024)
NH = 4               # attention heads      (real XLM: 8)
HD = H // NH         # head dim
FFN = 64             # FFN inner dim        (real XLM: 4096)
NLAYERS = 2          # encoder layers       (real XLM: 12)
VOCAB = 50
NLANGS = 4
MAXPOS = 16
NCLASSES = 3
NCLS_PAD = 128       # classifier logits padded to a full 128-lane store
LN_EPS = 1e-12
NEG = -1e30

# TODO(synk): at real XLM scale (H=1024, long S) cast matmul operands to bf16
# (f32 accumulation) and tile attention flash-style over KV blocks; at these
# toy shapes that only costs accuracy, so f32 / full (S,S) scores are kept.


# ----------------------------- in-kernel helpers ----------------------------
def _layer_norm(x, g, b):
    mu = jnp.mean(x, axis=-1, keepdims=True)
    var = jnp.mean(jnp.square(x - mu), axis=-1, keepdims=True)
    return (x - mu) * jax.lax.rsqrt(var + LN_EPS) * g + b


def _gelu(x):
    # NOTE: tanh-approx GELU (HF XLM uses erf GELU); numerically very close.
    c = math.sqrt(2.0 / math.pi)
    return 0.5 * x * (1.0 + jnp.tanh(c * (x + 0.044715 * x * x * x)))


# ----------------------------- fused kernel ----------------------------------
def xlm_fused_kernel(emb_ref, amask_ref, mmask_ref, embg_ref, embb_ref,
                     wqkv_ref, bqkv_ref, wo_ref, bo_ref,
                     ln1g_ref, ln1b_ref, w1_ref, b1_ref, w2_ref, b2_ref,
                     ln2g_ref, ln2b_ref, clsw_ref, clsb_ref,
                     logits_ref, x_ref):
    l = pl.program_id(1)
    mmul = mmask_ref[0]          # (S, 1) multiplicative padding mask
    abias = amask_ref[0]         # (1, S) additive attention bias (0 / -1e30)

    # ---- layer 0 only: embedding LayerNorm (fused; saves a standalone call) --
    @pl.when(l == 0)
    def _init():
        x_ref[...] = _layer_norm(emb_ref[0], embg_ref[...], embb_ref[...]) * mmul

    x = x_ref[...]               # (S, H), resident in VMEM across the layer axis

    # ---- multi-head self-attention (full-width fused QKV projection) --------
    qkv = jnp.dot(x, wqkv_ref[0], preferred_element_type=jnp.float32) + bqkv_ref[0]
    q = qkv[:, 0:H]
    k = qkv[:, H:2 * H]
    v = qkv[:, 2 * H:3 * H]
    scale = 1.0 / math.sqrt(HD)

    ctx_heads = []
    for h in range(NH):          # unrolled; only the tiny score/ctx matmuls are per-head
        sl = slice(h * HD, (h + 1) * HD)
        s = jax.lax.dot_general(q[:, sl], k[:, sl], (((1,), (1,)), ((), ())),
                                preferred_element_type=jnp.float32) * scale
        s = s + abias
        s = s - jnp.max(s, axis=-1, keepdims=True)
        p = jnp.exp(s)
        p = p * pl.reciprocal(jnp.sum(p, axis=-1, keepdims=True), approx=True)
        ctx_heads.append(jnp.dot(p, v[:, sl], preferred_element_type=jnp.float32))
    ctx = jnp.concatenate(ctx_heads, axis=-1)                       # (S, H)
    attn = jnp.dot(ctx, wo_ref[0], preferred_element_type=jnp.float32) + bo_ref[0]

    t = _layer_norm(x + attn, ln1g_ref[0], ln1b_ref[0])

    # ---- feed-forward --------------------------------------------------------
    h1 = jnp.dot(t, w1_ref[0], preferred_element_type=jnp.float32) + b1_ref[0]
    h1 = _gelu(h1)
    ff = jnp.dot(h1, w2_ref[0], preferred_element_type=jnp.float32) + b2_ref[0]
    t = _layer_norm(t + ff, ln2g_ref[0], ln2b_ref[0])
    x_ref[...] = t * mmul

    # ---- last layer: mean-pool over sequence + classifier (fused) ------------
    @pl.when(l == NLAYERS - 1)
    def _finalize():
        pooled = jnp.mean(x_ref[...], axis=0, keepdims=True)        # (1, H)
        logits_ref[0] = (jnp.dot(pooled, clsw_ref[...],
                                 preferred_element_type=jnp.float32)
                         + clsb_ref[...])                           # (1, NCLS_PAD)


# ----------------------------- BlockSpec helpers ------------------------------
def _const2d(arr):
    # whole (small) 2-D array, same block for every grid step
    return pl.BlockSpec(arr.shape, lambda b, l: (0, 0))


def _stacked(arr):
    # per-layer weight stacked on a leading NLAYERS axis; stream layer l's block
    return pl.BlockSpec((1,) + tuple(arr.shape[1:]), lambda b, l: (l, 0, 0))


_LAYER_KEYS = ("wqkv", "bqkv", "wo", "bo", "ln1_g", "ln1_b",
               "w1", "b1", "w2", "b2", "ln2_g", "ln2_b")


# ----------------------------- parameters ------------------------------------
def init_params(key):
    def nrm(k, shape, scale=0.02):
        return (scale * jax.random.normal(k, shape)).astype(jnp.float32)

    keys = jax.random.split(key, 8)
    params = {
        "word_emb": nrm(keys[0], (VOCAB, H)),
        "pos_emb":  nrm(keys[1], (MAXPOS, H)),
        "lang_emb": nrm(keys[2], (NLANGS, H)),
        "emb_ln_g": jnp.ones((1, H), jnp.float32),
        "emb_ln_b": jnp.zeros((1, H), jnp.float32),
    }
    # classifier (torch Linear weight transposed), padded to 128 output lanes
    cls_w = nrm(keys[3], (H, NCLASSES))
    params["cls_w"] = jnp.zeros((H, NCLS_PAD), jnp.float32).at[:, :NCLASSES].set(cls_w)
    params["cls_b"] = jnp.zeros((1, NCLS_PAD), jnp.float32)

    # per-layer weights stacked on a leading NLAYERS axis (streamed per grid step)
    params["layers"] = {
        # fused [Wq | Wk | Wv]; within each H-block head h owns cols h*HD:(h+1)*HD
        "wqkv":  nrm(keys[4], (NLAYERS, H, 3 * H)),
        "bqkv":  jnp.zeros((NLAYERS, 1, 3 * H), jnp.float32),
        "wo":    nrm(keys[5], (NLAYERS, H, H)),
        "bo":    jnp.zeros((NLAYERS, 1, H), jnp.float32),
        "ln1_g": jnp.ones((NLAYERS, 1, H), jnp.float32),
        "ln1_b": jnp.zeros((NLAYERS, 1, H), jnp.float32),
        "w1":    nrm(keys[6], (NLAYERS, H, FFN)),
        "b1":    jnp.zeros((NLAYERS, 1, FFN), jnp.float32),
        "w2":    nrm(keys[7], (NLAYERS, FFN, H)),
        "b2":    jnp.zeros((NLAYERS, 1, H), jnp.float32),
        "ln2_g": jnp.ones((NLAYERS, 1, H), jnp.float32),
        "ln2_b": jnp.zeros((NLAYERS, 1, H), jnp.float32),
    }
    return params


# ----------------------------- full forward ----------------------------------
def xlm_forward(params, languages, sequences, attention_mask, tokens_type):
    # Embedding gathers are glue (host-side JAX); everything else is one kernel.
    pos_ids = jnp.arange(S)
    emb = (params["word_emb"][sequences]
           + params["pos_emb"][pos_ids][None, :, :]
           + params["lang_emb"][languages]
           + params["word_emb"][tokens_type]).astype(jnp.float32)      # (B, S, H)

    fmask = attention_mask.astype(jnp.float32)
    mmask = fmask[:, :, None]                        # (B, S, 1) multiplicative
    amask = (fmask - 1.0)[:, None, :] * (-NEG)       # (B, 1, S) additive: 0 / -1e30

    stacked = [params["layers"][k] for k in _LAYER_KEYS]

    flops = B * NLAYERS * (2 * S * H * 3 * H             # fused QKV projection
                           + 2 * NH * S * S * HD * 2     # scores + context
                           + 2 * S * H * H               # output projection
                           + 4 * S * H * FFN)            # FFN (two matmuls)
    flops += B * 2 * H * NCLS_PAD                        # classifier
    transcendentals = B * NLAYERS * (NH * S * S + S * FFN)
    weight_bytes = 4 * sum(int(w.size) for w in stacked)
    bytes_accessed = (4 * (int(emb.size) + int(amask.size) + int(mmask.size))
                      + B * weight_bytes                 # weights re-streamed per batch row
                      + 4 * B * NCLS_PAD)

    logits_pad = pl.pallas_call(
        xlm_fused_kernel,
        out_shape=jax.ShapeDtypeStruct((B, 1, NCLS_PAD), jnp.float32),
        grid=(B, NLAYERS),
        in_specs=[
            pl.BlockSpec((1, S, H), lambda b, l: (b, 0, 0)),   # embeddings
            pl.BlockSpec((1, 1, S), lambda b, l: (b, 0, 0)),   # additive attn mask
            pl.BlockSpec((1, S, 1), lambda b, l: (b, 0, 0)),   # multiplicative mask
            _const2d(params["emb_ln_g"]), _const2d(params["emb_ln_b"]),
        ] + [_stacked(w) for w in stacked] + [
            _const2d(params["cls_w"]), _const2d(params["cls_b"]),
        ],
        out_specs=pl.BlockSpec((1, 1, NCLS_PAD), lambda b, l: (b, 0, 0)),
        scratch_shapes=[pltpu.VMEM((S, H), jnp.float32)],      # resident activation
        compiler_params=pltpu.CompilerParams(
            dimension_semantics=("parallel", "arbitrary")),
        cost_estimate=pl.CostEstimate(flops=int(flops),
                                      transcendentals=int(transcendentals),
                                      bytes_accessed=int(bytes_accessed)),
    )(emb, amask, mmask, params["emb_ln_g"], params["emb_ln_b"],
      *stacked, params["cls_w"], params["cls_b"])

    return logits_pad[:, 0, :NCLASSES]


# ----------------------------- main -------------------------------------------
if __name__ == "__main__":
    key = jax.random.PRNGKey(0)
    kparams, kdata = jax.random.split(key)
    params = init_params(kparams)

    k1, k2, k3 = jax.random.split(kdata, 3)
    sequences = jax.random.randint(k1, (B, S), 0, VOCAB, dtype=jnp.int32)
    languages = jax.random.randint(k2, (B, S), 0, NLANGS, dtype=jnp.int32)
    tokens_type = jax.random.randint(k3, (B, S), 0, 2, dtype=jnp.int32)
    attention_mask = jnp.ones((B, S), jnp.int32).at[1, 6:].set(0)

    logits = xlm_forward(params, languages, sequences, attention_mask, tokens_type)
    logits = jax.block_until_ready(logits)
    assert logits.shape == (B, NCLASSES) and logits.dtype == jnp.float32
    print("KERNEL_OK")
</pallas_src>

<mosaic_0001>
module attributes {stable_mosaic.version = 11 : i64} {
  func.func @xlm_fused_kernel(%arg0: i32, %arg1: i32, %arg2: memref<1x8x32xf32, #tpu.memory_space<vmem>>, %arg3: memref<1x1x8xf32, #tpu.memory_space<vmem>>, %arg4: memref<1x8x1xf32, #tpu.memory_space<vmem>>, %arg5: memref<1x32xf32, #tpu.memory_space<vmem>>, %arg6: memref<1x32xf32, #tpu.memory_space<vmem>>, %arg7: memref<1x32x96xf32, #tpu.memory_space<vmem>>, %arg8: memref<1x1x96xf32, #tpu.memory_space<vmem>>, %arg9: memref<1x32x32xf32, #tpu.memory_space<vmem>>, %arg10: memref<1x1x32xf32, #tpu.memory_space<vmem>>, %arg11: memref<1x1x32xf32, #tpu.memory_space<vmem>>, %arg12: memref<1x1x32xf32, #tpu.memory_space<vmem>>, %arg13: memref<1x32x64xf32, #tpu.memory_space<vmem>>, %arg14: memref<1x1x64xf32, #tpu.memory_space<vmem>>, %arg15: memref<1x64x32xf32, #tpu.memory_space<vmem>>, %arg16: memref<1x1x32xf32, #tpu.memory_space<vmem>>, %arg17: memref<1x1x32xf32, #tpu.memory_space<vmem>>, %arg18: memref<1x1x32xf32, #tpu.memory_space<vmem>>, %arg19: memref<32x128xf32, #tpu.memory_space<vmem>>, %arg20: memref<1x128xf32, #tpu.memory_space<vmem>>, %arg21: memref<1x1x128xf32, #tpu.memory_space<vmem>>, %arg22: memref<8x32xf32, #tpu.memory_space<vmem>>) attributes {dimension_semantics = [#tpu.dimension_semantics<parallel>, #tpu.dimension_semantics<arbitrary>], iteration_bounds = array<i64: 2, 2>, scalar_prefetch = 0 : i64, scratch_operands = 1 : i64, tpu.core_type = #tpu.core_type<tc>, window_params = [{transform_indices = @transform_0, window_bounds = array<i64: 1, 8, 32>}, {transform_indices = @transform_1, window_bounds = array<i64: 1, 1, 8>}, {transform_indices = @transform_2, window_bounds = array<i64: 1, 8, 1>}, {pipeline_mode = #tpu.pipeline_mode<synchronous>, transform_indices = @transform_3, window_bounds = array<i64: 1, 32>}, {pipeline_mode = #tpu.pipeline_mode<synchronous>, transform_indices = @transform_4, window_bounds = array<i64: 1, 32>}, {transform_indices = @transform_5, window_bounds = array<i64: 1, 32, 96>}, {transform_indices = @transform_6, window_bounds = array<i64: 1, 1, 96>}, {transform_indices = @transform_7, window_bounds = array<i64: 1, 32, 32>}, {transform_indices = @transform_8, window_bounds = array<i64: 1, 1, 32>}, {transform_indices = @transform_9, window_bounds = array<i64: 1, 1, 32>}, {transform_indices = @transform_10, window_bounds = array<i64: 1, 1, 32>}, {transform_indices = @transform_11, window_bounds = array<i64: 1, 32, 64>}, {transform_indices = @transform_12, window_bounds = array<i64: 1, 1, 64>}, {transform_indices = @transform_13, window_bounds = array<i64: 1, 64, 32>}, {transform_indices = @transform_14, window_bounds = array<i64: 1, 1, 32>}, {transform_indices = @transform_15, window_bounds = array<i64: 1, 1, 32>}, {transform_indices = @transform_16, window_bounds = array<i64: 1, 1, 32>}, {pipeline_mode = #tpu.pipeline_mode<synchronous>, transform_indices = @transform_17, window_bounds = array<i64: 32, 128>}, {pipeline_mode = #tpu.pipeline_mode<synchronous>, transform_indices = @transform_18, window_bounds = array<i64: 1, 128>}, {transform_indices = @transform_19, window_bounds = array<i64: 1, 1, 128>}]} {
    %c0 = arith.constant 0 : index
    %c0_0 = arith.constant 0 : index
    %c0_1 = arith.constant 0 : index
    %0 = vector.load %arg4[%c0, %c0_0, %c0_1] : memref<1x8x1xf32, #tpu.memory_space<vmem>>, vector<1x8x1xf32>
    %1 = vector.shape_cast %0 : vector<1x8x1xf32> to vector<8x1xf32>
    %c0_2 = arith.constant 0 : index
    %c0_3 = arith.constant 0 : index
    %c0_4 = arith.constant 0 : index
    %2 = vector.load %arg3[%c0_2, %c0_3, %c0_4] : memref<1x1x8xf32, #tpu.memory_space<vmem>>, vector<1x1x8xf32>
    %3 = vector.shape_cast %2 : vector<1x1x8xf32> to vector<1x8xf32>
    %c0_i32 = arith.constant 0 : i32
    %4 = arith.cmpi eq, %arg1, %c0_i32 : i32
    %5 = arith.extui %4 : i1 to i32
    %c0_i32_5 = arith.constant 0 : i32
    %6 = arith.cmpi ne, %5, %c0_i32_5 : i32
    scf.if %6 {
      %c0_84 = arith.constant 0 : index
      %c0_85 = arith.constant 0 : index
      %c0_86 = arith.constant 0 : index
      %189 = vector.load %arg2[%c0_84, %c0_85, %c0_86] : memref<1x8x32xf32, #tpu.memory_space<vmem>>, vector<1x8x32xf32>
      %190 = vector.shape_cast %189 : vector<1x8x32xf32> to vector<8x32xf32>
      %c0_87 = arith.constant 0 : index
      %c0_88 = arith.constant 0 : index
      %191 = vector.load %arg5[%c0_87, %c0_88] : memref<1x32xf32, #tpu.memory_space<vmem>>, vector<1x32xf32>
      %c0_89 = arith.constant 0 : index
      %c0_90 = arith.constant 0 : index
      %192 = vector.load %arg6[%c0_89, %c0_90] : memref<1x32xf32, #tpu.memory_space<vmem>>, vector<1x32xf32>
      %cst_91 = arith.constant dense<0.000000e+00> : vector<8xf32>
      %193 = vector.multi_reduction <add>, %190, %cst_91 [1] : vector<8x32xf32> to vector<8xf32>
      %194 = vector.shape_cast %193 : vector<8xf32> to vector<8x1xf32>
      %cst_92 = arith.constant 3.200000e+01 : f32
      %195 = vector.broadcast %cst_92 : f32 to vector<8x1xf32>
      %196 = arith.divf %194, %195 : vector<8x1xf32>
      %197 = vector.broadcast %196 : vector<8x1xf32> to vector<8x32xf32>
      %198 = arith.subf %190, %197 : vector<8x32xf32>
      %199 = arith.mulf %198, %198 : vector<8x32xf32>
      %cst_93 = arith.constant dense<0.000000e+00> : vector<8xf32>
      %200 = vector.multi_reduction <add>, %199, %cst_93 [1] : vector<8x32xf32> to vector<8xf32>
      %201 = vector.shape_cast %200 : vector<8xf32> to vector<8x1xf32>
      %cst_94 = arith.constant 3.200000e+01 : f32
      %202 = vector.broadcast %cst_94 : f32 to vector<8x1xf32>
      %203 = arith.divf %201, %202 : vector<8x1xf32>
      %204 = vector.broadcast %196 : vector<8x1xf32> to vector<8x32xf32>
      %205 = arith.subf %190, %204 : vector<8x32xf32>
      %cst_95 = arith.constant 9.99999996E-13 : f32
      %206 = vector.broadcast %cst_95 : f32 to vector<8x1xf32>
      %207 = arith.addf %203, %206 : vector<8x1xf32>
      %208 = math.rsqrt %207 : vector<8x1xf32>
      %209 = vector.broadcast %208 : vector<8x1xf32> to vector<8x32xf32>
      %210 = arith.mulf %205, %209 : vector<8x32xf32>
      %211 = vector.broadcast %191 : vector<1x32xf32> to vector<8x32xf32>
      %212 = arith.mulf %210, %211 : vector<8x32xf32>
      %213 = vector.broadcast %192 : vector<1x32xf32> to vector<8x32xf32>
      %214 = arith.addf %212, %213 : vector<8x32xf32>
      %215 = vector.broadcast %1 : vector<8x1xf32> to vector<8x32xf32>
      %216 = arith.mulf %214, %215 : vector<8x32xf32>
      %c0_96 = arith.constant 0 : index
      %c0_97 = arith.constant 0 : index
      %217 = vector.load %arg22[%c0_96, %c0_97] : memref<8x32xf32, #tpu.memory_space<vmem>>, vector<8x32xf32>
      tpu.vector_store %arg22[%c0_96, %c0_97], %216 {strides = array<i32>} : memref<8x32xf32, #tpu.memory_space<vmem>>, vector<8x32xf32>,
    } else {
    }
    %c0_6 = arith.constant 0 : index
    %c0_7 = arith.constant 0 : index
    %7 = vector.load %arg22[%c0_6, %c0_7] : memref<8x32xf32, #tpu.memory_space<vmem>>, vector<8x32xf32>
    %c0_8 = arith.constant 0 : index
    %c0_9 = arith.constant 0 : index
    %c0_10 = arith.constant 0 : index
    %8 = vector.load %arg7[%c0_8, %c0_9, %c0_10] : memref<1x32x96xf32, #tpu.memory_space<vmem>>, vector<1x32x96xf32>
    %9 = vector.shape_cast %8 : vector<1x32x96xf32> to vector<32x96xf32>
    %cst = arith.constant dense<0.000000e+00> : vector<8x96xf32>
    %10 = tpu.matmul %7, %9, %cst {dimension_numbers = #tpu.dot_dimension_numbers<[1], [0], [0], [1], [0, 0, 1, 1], [], []>} : vector<8x32xf32>, vector<32x96xf32>, vector<8x96xf32> -> vector<8x96xf32>
    %c0_11 = arith.constant 0 : index
    %c0_12 = arith.constant 0 : index
    %c0_13 = arith.constant 0 : index
    %11 = vector.load %arg8[%c0_11, %c0_12, %c0_13] : memref<1x1x96xf32, #tpu.memory_space<vmem>>, vector<1x1x96xf32>
    %12 = vector.shape_cast %11 : vector<1x1x96xf32> to vector<1x96xf32>
    %13 = vector.broadcast %12 : vector<1x96xf32> to vector<8x96xf32>
    %14 = arith.addf %10, %13 : vector<8x96xf32>
    %15 = vector.extract_strided_slice %14 {offsets = [0, 0], sizes = [8, 32], strides = [1, 1]} : vector<8x96xf32> to vector<8x32xf32>
    %16 = vector.extract_strided_slice %14 {offsets = [0, 32], sizes = [8, 32], strides = [1, 1]} : vector<8x96xf32> to vector<8x32xf32>
    %17 = vector.extract_strided_slice %14 {offsets = [0, 64], sizes = [8, 32], strides = [1, 1]} : vector<8x96xf32> to vector<8x32xf32>
    %18 = vector.extract_strided_slice %15 {offsets = [0, 0], sizes = [8, 8], strides = [1, 1]} : vector<8x32xf32> to vector<8x8xf32>
    %19 = vector.extract_strided_slice %16 {offsets = [0, 0], sizes = [8, 8], strides = [1, 1]} : vector<8x32xf32> to vector<8x8xf32>
    %cst_14 = arith.constant dense<0.000000e+00> : vector<8x8xf32>
    %20 = tpu.matmul %18, %19, %cst_14 {dimension_numbers = #tpu.dot_dimension_numbers<[1], [1], [0], [0], [0, 0, 1, 0], [], []>} : vector<8x8xf32>, vector<8x8xf32>, vector<8x8xf32> -> vector<8x8xf32>
    %cst_15 = arith.constant 0.353553385 : f32
    %21 = vector.broadcast %cst_15 : f32 to vector<8x8xf32>
    %22 = arith.mulf %20, %21 : vector<8x8xf32>
    %23 = vector.broadcast %3 : vector<1x8xf32> to vector<8x8xf32>
    %24 = arith.addf %22, %23 : vector<8x8xf32>
    %cst_16 = arith.constant dense<0xFF800000> : vector<8xf32>
    %25 = vector.multi_reduction <maximumf>, %24, %cst_16 [1] : vector<8x8xf32> to vector<8xf32>
    %26 = vector.shape_cast %25 : vector<8xf32> to vector<8x1xf32>
    %27 = vector.broadcast %26 : vector<8x1xf32> to vector<8x8xf32>
    %28 = arith.subf %24, %27 : vector<8x8xf32>
    %29 = math.exp %28 : vector<8x8xf32>
    %cst_17 = arith.constant dense<0.000000e+00> : vector<8xf32>
    %30 = vector.multi_reduction <add>, %29, %cst_17 [1] : vector<8x8xf32> to vector<8xf32>
    %31 = vector.shape_cast %30 : vector<8xf32> to vector<8x1xf32>
    %32 = tpu.reciprocal %31 {approx = true} : vector<8x1xf32> -> vector<8x1xf32>
    %33 = vector.broadcast %32 : vector<8x1xf32> to vector<8x8xf32>
    %34 = arith.mulf %29, %33 : vector<8x8xf32>
    %35 = vector.extract_strided_slice %17 {offsets = [0, 0], sizes = [8, 8], strides = [1, 1]} : vector<8x32xf32> to vector<8x8xf32>
    %cst_18 = arith.constant dense<0.000000e+00> : vector<8x8xf32>
    %36 = tpu.matmul %34, %35, %cst_18 {dimension_numbers = #tpu.dot_dimension_numbers<[1], [0], [0], [1], [0, 0, 1, 1], [], []>} : vector<8x8xf32>, vector<8x8xf32>, vector<8x8xf32> -> vector<8x8xf32>
    %37 = vector.extract_strided_slice %15 {offsets = [0, 8], sizes = [8, 8], strides = [1, 1]} : vector<8x32xf32> to vector<8x8xf32>
    %38 = vector.extract_strided_slice %16 {offsets = [0, 8], sizes = [8, 8], strides = [1, 1]} : vector<8x32xf32> to vector<8x8xf32>
    %cst_19 = arith.constant dense<0.000000e+00> : vector<8x8xf32>
    %39 = tpu.matmul %37, %38, %cst_19 {dimension_numbers = #tpu.dot_dimension_numbers<[1], [1], [0], [0], [0, 0, 1, 0], [], []>} : vector<8x8xf32>, vector<8x8xf32>, vector<8x8xf32> -> vector<8x8xf32>
    %cst_20 = arith.constant 0.353553385 : f32
    %40 = vector.broadcast %cst_20 : f32 to vector<8x8xf32>
    %41 = arith.mulf %39, %40 : vector<8x8xf32>
    %42 = vector.broadcast %3 : vector<1x8xf32> to vector<8x8xf32>
    %43 = arith.addf %41, %42 : vector<8x8xf32>
    %cst_21 = arith.constant dense<0xFF800000> : vector<8xf32>
    %44 = vector.multi_reduction <maximumf>, %43, %cst_21 [1] : vector<8x8xf32> to vector<8xf32>
    %45 = vector.shape_cast %44 : vector<8xf32> to vector<8x1xf32>
    %46 = vector.broadcast %45 : vector<8x1xf32> to vector<8x8xf32>
    %47 = arith.subf %43, %46 : vector<8x8xf32>
    %48 = math.exp %47 : vector<8x8xf32>
    %cst_22 = arith.constant dense<0.000000e+00> : vector<8xf32>
    %49 = vector.multi_reduction <add>, %48, %cst_22 [1] : vector<8x8xf32> to vector<8xf32>
    %50 = vector.shape_cast %49 : vector<8xf32> to vector<8x1xf32>
    %51 = tpu.reciprocal %50 {approx = true} : vector<8x1xf32> -> vector<8x1xf32>
    %52 = vector.broadcast %51 : vector<8x1xf32> to vector<8x8xf32>
    %53 = arith.mulf %48, %52 : vector<8x8xf32>
    %54 = vector.extract_strided_slice %17 {offsets = [0, 8], sizes = [8, 8], strides = [1, 1]} : vector<8x32xf32> to vector<8x8xf32>
    %cst_23 = arith.constant dense<0.000000e+00> : vector<8x8xf32>
    %55 = tpu.matmul %53, %54, %cst_23 {dimension_numbers = #tpu.dot_dimension_numbers<[1], [0], [0], [1], [0, 0, 1, 1], [], []>} : vector<8x8xf32>, vector<8x8xf32>, vector<8x8xf32> -> vector<8x8xf32>
    %56 = vector.extract_strided_slice %15 {offsets = [0, 16], sizes = [8, 8], strides = [1, 1]} : vector<8x32xf32> to vector<8x8xf32>
    %57 = vector.extract_strided_slice %16 {offsets = [0, 16], sizes = [8, 8], strides = [1, 1]} : vector<8x32xf32> to vector<8x8xf32>
    %cst_24 = arith.constant dense<0.000000e+00> : vector<8x8xf32>
    %58 = tpu.matmul %56, %57, %cst_24 {dimension_numbers = #tpu.dot_dimension_numbers<[1], [1], [0], [0], [0, 0, 1, 0], [], []>} : vector<8x8xf32>, vector<8x8xf32>, vector<8x8xf32> -> vector<8x8xf32>
    %cst_25 = arith.constant 0.353553385 : f32
    %59 = vector.broadcast %cst_25 : f32 to vector<8x8xf32>
    %60 = arith.mulf %58, %59 : vector<8x8xf32>
    %61 = vector.broadcast %3 : vector<1x8xf32> to vector<8x8xf32>
    %62 = arith.addf %60, %61 : vector<8x8xf32>
    %cst_26 = arith.constant dense<0xFF800000> : vector<8xf32>
    %63 = vector.multi_reduction <maximumf>, %62, %cst_26 [1] : vector<8x8xf32> to vector<8xf32>
    %64 = vector.shape_cast %63 : vector<8xf32> to vector<8x1xf32>
    %65 = vector.broadcast %64 : vector<8x1xf32> to vector<8x8xf32>
    %66 = arith.subf %62, %65 : vector<8x8xf32>
    %67 = math.exp %66 : vector<8x8xf32>
    %cst_27 = arith.constant dense<0.000000e+00> : vector<8xf32>
    %68 = vector.multi_reduction <add>, %67, %cst_27 [1] : vector<8x8xf32> to vector<8xf32>
    %69 = vector.shape_cast %68 : vector<8xf32> to vector<8x1xf32>
    %70 = tpu.reciprocal %69 {approx = true} : vector<8x1xf32> -> vector<8x1xf32>
    %71 = vector.broadcast %70 : vector<8x1xf32> to vector<8x8xf32>
    %72 = arith.mulf %67, %71 : vector<8x8xf32>
    %73 = vector.extract_strided_slice %17 {offsets = [0, 16], sizes = [8, 8], strides = [1, 1]} : vector<8x32xf32> to vector<8x8xf32>
    %cst_28 = arith.constant dense<0.000000e+00> : vector<8x8xf32>
    %74 = tpu.matmul %72, %73, %cst_28 {dimension_numbers = #tpu.dot_dimension_numbers<[1], [0], [0], [1], [0, 0, 1, 1], [], []>} : vector<8x8xf32>, vector<8x8xf32>, vector<8x8xf32> -> vector<8x8xf32>
    %75 = vector.extract_strided_slice %15 {offsets = [0, 24], sizes = [8, 8], strides = [1, 1]} : vector<8x32xf32> to vector<8x8xf32>
    %76 = vector.extract_strided_slice %16 {offsets = [0, 24], sizes = [8, 8], strides = [1, 1]} : vector<8x32xf32> to vector<8x8xf32>
    %cst_29 = arith.constant dense<0.000000e+00> : vector<8x8xf32>
    %77 = tpu.matmul %75, %76, %cst_29 {dimension_numbers = #tpu.dot_dimension_numbers<[1], [1], [0], [0], [0, 0, 1, 0], [], []>} : vector<8x8xf32>, vector<8x8xf32>, vector<8x8xf32> -> vector<8x8xf32>
    %cst_30 = arith.constant 0.353553385 : f32
    %78 = vector.broadcast %cst_30 : f32 to vector<8x8xf32>
    %79 = arith.mulf %77, %78 : vector<8x8xf32>
    %80 = vector.broadcast %3 : vector<1x8xf32> to vector<8x8xf32>
    %81 = arith.addf %79, %80 : vector<8x8xf32>
    %cst_31 = arith.constant dense<0xFF800000> : vector<8xf32>
    %82 = vector.multi_reduction <maximumf>, %81, %cst_31 [1] : vector<8x8xf32> to vector<8xf32>
    %83 = vector.shape_cast %82 : vector<8xf32> to vector<8x1xf32>
    %84 = vector.broadcast %83 : vector<8x1xf32> to vector<8x8xf32>
    %85 = arith.subf %81, %84 : vector<8x8xf32>
    %86 = math.exp %85 : vector<8x8xf32>
    %cst_32 = arith.constant dense<0.000000e+00> : vector<8xf32>
    %87 = vector.multi_reduction <add>, %86, %cst_32 [1] : vector<8x8xf32> to vector<8xf32>
    %88 = vector.shape_cast %87 : vector<8xf32> to vector<8x1xf32>
    %89 = tpu.reciprocal %88 {approx = true} : vector<8x1xf32> -> vector<8x1xf32>
    %90 = vector.broadcast %89 : vector<8x1xf32> to vector<8x8xf32>
    %91 = arith.mulf %86, %90 : vector<8x8xf32>
    %92 = vector.extract_strided_slice %17 {offsets = [0, 24], sizes = [8, 8], strides = [1, 1]} : vector<8x32xf32> to vector<8x8xf32>
    %cst_33 = arith.constant dense<0.000000e+00> : vector<8x8xf32>
    %93 = tpu.matmul %91, %92, %cst_33 {dimension_numbers = #tpu.dot_dimension_numbers<[1], [0], [0], [1], [0, 0, 1, 1], [], []>} : vector<8x8xf32>, vector<8x8xf32>, vector<8x8xf32> -> vector<8x8xf32>
    %94 = tpu.concatenate %36, %55, %74, %93 in 1 : vector<8x8xf32>, vector<8x8xf32>, vector<8x8xf32>, vector<8x8xf32> -> vector<8x32xf32>
    %c0_34 = arith.constant 0 : index
    %c0_35 = arith.constant 0 : index
    %c0_36 = arith.constant 0 : index
    %95 = vector.load %arg9[%c0_34, %c0_35, %c0_36] : memref<1x32x32xf32, #tpu.memory_space<vmem>>, vector<1x32x32xf32>
    %96 = vector.shape_cast %95 : vector<1x32x32xf32> to vector<32x32xf32>
    %cst_37 = arith.constant dense<0.000000e+00> : vector<8x32xf32>
    %97 = tpu.matmul %94, %96, %cst_37 {dimension_numbers = #tpu.dot_dimension_numbers<[1], [0], [0], [1], [0, 0, 1, 1], [], []>} : vector<8x32xf32>, vector<32x32xf32>, vector<8x32xf32> -> vector<8x32xf32>
    %c0_38 = arith.constant 0 : index
    %c0_39 = arith.constant 0 : index
    %c0_40 = arith.constant 0 : index
    %98 = vector.load %arg10[%c0_38, %c0_39, %c0_40] : memref<1x1x32xf32, #tpu.memory_space<vmem>>, vector<1x1x32xf32>
    %99 = vector.shape_cast %98 : vector<1x1x32xf32> to vector<1x32xf32>
    %100 = vector.broadcast %99 : vector<1x32xf32> to vector<8x32xf32>
    %101 = arith.addf %97, %100 : vector<8x32xf32>
    %102 = arith.addf %7, %101 : vector<8x32xf32>
    %c0_41 = arith.constant 0 : index
    %c0_42 = arith.constant 0 : index
    %c0_43 = arith.constant 0 : index
    %103 = vector.load %arg11[%c0_41, %c0_42, %c0_43] : memref<1x1x32xf32, #tpu.memory_space<vmem>>, vector<1x1x32xf32>
    %104 = vector.shape_cast %103 : vector<1x1x32xf32> to vector<1x32xf32>
    %c0_44 = arith.constant 0 : index
    %c0_45 = arith.constant 0 : index
    %c0_46 = arith.constant 0 : index
    %105 = vector.load %arg12[%c0_44, %c0_45, %c0_46] : memref<1x1x32xf32, #tpu.memory_space<vmem>>, vector<1x1x32xf32>
    %106 = vector.shape_cast %105 : vector<1x1x32xf32> to vector<1x32xf32>
    %cst_47 = arith.constant dense<0.000000e+00> : vector<8xf32>
    %107 = vector.multi_reduction <add>, %102, %cst_47 [1] : vector<8x32xf32> to vector<8xf32>
    %108 = vector.shape_cast %107 : vector<8xf32> to vector<8x1xf32>
    %cst_48 = arith.constant 3.200000e+01 : f32
    %109 = vector.broadcast %cst_48 : f32 to vector<8x1xf32>
    %110 = arith.divf %108, %109 : vector<8x1xf32>
    %111 = vector.broadcast %110 : vector<8x1xf32> to vector<8x32xf32>
    %112 = arith.subf %102, %111 : vector<8x32xf32>
    %113 = arith.mulf %112, %112 : vector<8x32xf32>
    %cst_49 = arith.constant dense<0.000000e+00> : vector<8xf32>
    %114 = vector.multi_reduction <add>, %113, %cst_49 [1] : vector<8x32xf32> to vector<8xf32>
    %115 = vector.shape_cast %114 : vector<8xf32> to vector<8x1xf32>
    %cst_50 = arith.constant 3.200000e+01 : f32
    %116 = vector.broadcast %cst_50 : f32 to vector<8x1xf32>
    %117 = arith.divf %115, %116 : vector<8x1xf32>
    %118 = vector.broadcast %110 : vector<8x1xf32> to vector<8x32xf32>
    %119 = arith.subf %102, %118 : vector<8x32xf32>
    %cst_51 = arith.constant 9.99999996E-13 : f32
    %120 = vector.broadcast %cst_51 : f32 to vector<8x1xf32>
    %121 = arith.addf %117, %120 : vector<8x1xf32>
    %122 = math.rsqrt %121 : vector<8x1xf32>
    %123 = vector.broadcast %122 : vector<8x1xf32> to vector<8x32xf32>
    %124 = arith.mulf %119, %123 : vector<8x32xf32>
    %125 = vector.broadcast %104 : vector<1x32xf32> to vector<8x32xf32>
    %126 = arith.mulf %124, %125 : vector<8x32xf32>
    %127 = vector.broadcast %106 : vector<1x32xf32> to vector<8x32xf32>
    %128 = arith.addf %126, %127 : vector<8x32xf32>
    %c0_52 = arith.constant 0 : index
    %c0_53 = arith.constant 0 : index
    %c0_54 = arith.constant 0 : index
    %129 = vector.load %arg13[%c0_52, %c0_53, %c0_54] : memref<1x32x64xf32, #tpu.memory_space<vmem>>, vector<1x32x64xf32>
    %130 = vector.shape_cast %129 : vector<1x32x64xf32> to vector<32x64xf32>
    %cst_55 = arith.constant dense<0.000000e+00> : vector<8x64xf32>
    %131 = tpu.matmul %128, %130, %cst_55 {dimension_numbers = #tpu.dot_dimension_numbers<[1], [0], [0], [1], [0, 0, 1, 1], [], []>} : vector<8x32xf32>, vector<32x64xf32>, vector<8x64xf32> -> vector<8x64xf32>
    %c0_56 = arith.constant 0 : index
    %c0_57 = arith.constant 0 : index
    %c0_58 = arith.constant 0 : index
    %132 = vector.load %arg14[%c0_56, %c0_57, %c0_58] : memref<1x1x64xf32, #tpu.memory_space<vmem>>, vector<1x1x64xf32>
    %133 = vector.shape_cast %132 : vector<1x1x64xf32> to vector<1x64xf32>
    %134 = vector.broadcast %133 : vector<1x64xf32> to vector<8x64xf32>
    %135 = arith.addf %131, %134 : vector<8x64xf32>
    %cst_59 = arith.constant 5.000000e-01 : f32
    %136 = vector.broadcast %cst_59 : f32 to vector<8x64xf32>
    %137 = arith.mulf %136, %135 : vector<8x64xf32>
    %cst_60 = arith.constant 4.471500e-02 : f32
    %138 = vector.broadcast %cst_60 : f32 to vector<8x64xf32>
    %139 = arith.mulf %138, %135 : vector<8x64xf32>
    %140 = arith.mulf %139, %135 : vector<8x64xf32>
    %141 = arith.mulf %140, %135 : vector<8x64xf32>
    %142 = arith.addf %135, %141 : vector<8x64xf32>
    %cst_61 = arith.constant 0.797884583 : f32
    %143 = vector.broadcast %cst_61 : f32 to vector<8x64xf32>
    %144 = arith.mulf %143, %142 : vector<8x64xf32>
    %145 = math.tanh %144 : vector<8x64xf32>
    %cst_62 = arith.constant 1.000000e+00 : f32
    %146 = vector.broadcast %cst_62 : f32 to vector<8x64xf32>
    %147 = arith.addf %146, %145 : vector<8x64xf32>
    %148 = arith.mulf %137, %147 : vector<8x64xf32>
    %c0_63 = arith.constant 0 : index
    %c0_64 = arith.constant 0 : index
    %c0_65 = arith.constant 0 : index
    %149 = vector.load %arg15[%c0_63, %c0_64, %c0_65] : memref<1x64x32xf32, #tpu.memory_space<vmem>>, vector<1x64x32xf32>
    %150 = vector.shape_cast %149 : vector<1x64x32xf32> to vector<64x32xf32>
    %cst_66 = arith.constant dense<0.000000e+00> : vector<8x32xf32>
    %151 = tpu.matmul %148, %150, %cst_66 {dimension_numbers = #tpu.dot_dimension_numbers<[1], [0], [0], [1], [0, 0, 1, 1], [], []>} : vector<8x64xf32>, vector<64x32xf32>, vector<8x32xf32> -> vector<8x32xf32>
    %c0_67 = arith.constant 0 : index
    %c0_68 = arith.constant 0 : index
    %c0_69 = arith.constant 0 : index
    %152 = vector.load %arg16[%c0_67, %c0_68, %c0_69] : memref<1x1x32xf32, #tpu.memory_space<vmem>>, vector<1x1x32xf32>
    %153 = vector.shape_cast %152 : vector<1x1x32xf32> to vector<1x32xf32>
    %154 = vector.broadcast %153 : vector<1x32xf32> to vector<8x32xf32>
    %155 = arith.addf %151, %154 : vector<8x32xf32>
    %156 = arith.addf %128, %155 : vector<8x32xf32>
    %c0_70 = arith.constant 0 : index
    %c0_71 = arith.constant 0 : index
    %c0_72 = arith.constant 0 : index
    %157 = vector.load %arg17[%c0_70, %c0_71, %c0_72] : memref<1x1x32xf32, #tpu.memory_space<vmem>>, vector<1x1x32xf32>
    %158 = vector.shape_cast %157 : vector<1x1x32xf32> to vector<1x32xf32>
    %c0_73 = arith.constant 0 : index
    %c0_74 = arith.constant 0 : index
    %c0_75 = arith.constant 0 : index
    %159 = vector.load %arg18[%c0_73, %c0_74, %c0_75] : memref<1x1x32xf32, #tpu.memory_space<vmem>>, vector<1x1x32xf32>
    %160 = vector.shape_cast %159 : vector<1x1x32xf32> to vector<1x32xf32>
    %cst_76 = arith.constant dense<0.000000e+00> : vector<8xf32>
    %161 = vector.multi_reduction <add>, %156, %cst_76 [1] : vector<8x32xf32> to vector<8xf32>
    %162 = vector.shape_cast %161 : vector<8xf32> to vector<8x1xf32>
    %cst_77 = arith.constant 3.200000e+01 : f32
    %163 = vector.broadcast %cst_77 : f32 to vector<8x1xf32>
    %164 = arith.divf %162, %163 : vector<8x1xf32>
    %165 = vector.broadcast %164 : vector<8x1xf32> to vector<8x32xf32>
    %166 = arith.subf %156, %165 : vector<8x32xf32>
    %167 = arith.mulf %166, %166 : vector<8x32xf32>
    %cst_78 = arith.constant dense<0.000000e+00> : vector<8xf32>
    %168 = vector.multi_reduction <add>, %167, %cst_78 [1] : vector<8x32xf32> to vector<8xf32>
    %169 = vector.shape_cast %168 : vector<8xf32> to vector<8x1xf32>
    %cst_79 = arith.constant 3.200000e+01 : f32
    %170 = vector.broadcast %cst_79 : f32 to vector<8x1xf32>
    %171 = arith.divf %169, %170 : vector<8x1xf32>
    %172 = vector.broadcast %164 : vector<8x1xf32> to vector<8x32xf32>
    %173 = arith.subf %156, %172 : vector<8x32xf32>
    %cst_80 = arith.constant 9.99999996E-13 : f32
    %174 = vector.broadcast %cst_80 : f32 to vector<8x1xf32>
    %175 = arith.addf %171, %174 : vector<8x1xf32>
    %176 = math.rsqrt %175 : vector<8x1xf32>
    %177 = vector.broadcast %176 : vector<8x1xf32> to vector<8x32xf32>
    %178 = arith.mulf %173, %177 : vector<8x32xf32>
    %179 = vector.broadcast %158 : vector<1x32xf32> to vector<8x32xf32>
    %180 = arith.mulf %178, %179 : vector<8x32xf32>
    %181 = vector.broadcast %160 : vector<1x32xf32> to vector<8x32xf32>
    %182 = arith.addf %180, %181 : vector<8x32xf32>
    %183 = vector.broadcast %1 : vector<8x1xf32> to vector<8x32xf32>
    %184 = arith.mulf %182, %183 : vector<8x32xf32>
    %c0_81 = arith.constant 0 : index
    %c0_82 = arith.constant 0 : index
    %185 = vector.load %arg22[%c0_81, %c0_82] : memref<8x32xf32, #tpu.memory_space<vmem>>, vector<8x32xf32>
    tpu.vector_store %arg22[%c0_81, %c0_82], %184 {strides = array<i32>} : memref<8x32xf32, #tpu.memory_space<vmem>>, vector<8x32xf32>,
    %c1_i32 = arith.constant 1 : i32
    %186 = arith.cmpi eq, %arg1, %c1_i32 : i32
    %187 = arith.extui %186 : i1 to i32
    %c0_i32_83 = arith.constant 0 : i32
    %188 = arith.cmpi ne, %187, %c0_i32_83 : i32
    scf.if %188 {
      %c0_84 = arith.constant 0 : index
      %c0_85 = arith.constant 0 : index
      %189 = vector.load %arg22[%c0_84, %c0_85] : memref<8x32xf32, #tpu.memory_space<vmem>>, vector<8x32xf32>
      %cst_86 = arith.constant dense<0.000000e+00> : vector<32xf32>
      %190 = vector.multi_reduction <add>, %189, %cst_86 [0] : vector<8x32xf32> to vector<32xf32>
      %191 = vector.shape_cast %190 : vector<32xf32> to vector<1x32xf32>
      %cst_87 = arith.constant 8.000000e+00 : f32
      %192 = vector.broadcast %cst_87 : f32 to vector<1x32xf32>
      %193 = arith.divf %191, %192 : vector<1x32xf32>
      %c0_88 = arith.constant 0 : index
      %c0_89 = arith.constant 0 : index
      %194 = vector.load %arg19[%c0_88, %c0_89] : memref<32x128xf32, #tpu.memory_space<vmem>>, vector<32x128xf32>
      %cst_90 = arith.constant dense<0.000000e+00> : vector<1x128xf32>
      %195 = tpu.matmul %193, %194, %cst_90 {dimension_numbers = #tpu.dot_dimension_numbers<[1], [0], [0], [1], [0, 0, 1, 1], [], []>} : vector<1x32xf32>, vector<32x128xf32>, vector<1x128xf32> -> vector<1x128xf32>
      %c0_91 = arith.constant 0 : index
      %c0_92 = arith.constant 0 : index
      %196 = vector.load %arg20[%c0_91, %c0_92] : memref<1x128xf32, #tpu.memory_space<vmem>>, vector<1x128xf32>
      %197 = arith.addf %195, %196 : vector<1x128xf32>
      %c0_93 = arith.constant 0 : index
      %c0_94 = arith.constant 0 : index
      %c0_95 = arith.constant 0 : index
      %198 = vector.load %arg21[%c0_93, %c0_94, %c0_95] : memref<1x1x128xf32, #tpu.memory_space<vmem>>, vector<1x1x128xf32>
      %199 = vector.shape_cast %198 : vector<1x1x128xf32> to vector<1x128xf32>
      %200 = vector.shape_cast %197 : vector<1x128xf32> to vector<1x1x128xf32>
      tpu.vector_store %arg21[%c0_93, %c0_94, %c0_95], %200 {strides = array<i32>} : memref<1x1x128xf32, #tpu.memory_space<vmem>>, vector<1x1x128xf32>,
    } else {
    }
    return
  }
  func.func @transform_0(%arg0: i32, %arg1: i32) -> (i32, i32, i32) {
    %c0_i32 = arith.constant 0 : i32
    %c0_i32_0 = arith.constant 0 : i32
    %c0_i32_1 = arith.constant 0 : i32
    return %arg0, %c0_i32, %c0_i32_0 : i32, i32, i32
  }
  func.func @transform_1(%arg0: i32, %arg1: i32) -> (i32, i32, i32) {
    %c0_i32 = arith.constant 0 : i32
    %c0_i32_0 = arith.constant 0 : i32
    %c0_i32_1 = arith.constant 0 : i32
    return %arg0, %c0_i32, %c0_i32_0 : i32, i32, i32
  }
  func.func @transform_2(%arg0: i32, %arg1: i32) -> (i32, i32, i32) {
    %c0_i32 = arith.constant 0 : i32
    %c0_i32_0 = arith.constant 0 : i32
    %c0_i32_1 = arith.constant 0 : i32
    return %arg0, %c0_i32, %c0_i32_0 : i32, i32, i32
  }
  func.func @transform_3(%arg0: i32, %arg1: i32) -> (i32, i32) {
    %c0_i32 = arith.constant 0 : i32
    %c0_i32_0 = arith.constant 0 : i32
    %c0_i32_1 = arith.constant 0 : i32
    return %c0_i32, %c0_i32_0 : i32, i32
  }
  func.func @transform_4(%arg0: i32, %arg1: i32) -> (i32, i32) {
    %c0_i32 = arith.constant 0 : i32
    %c0_i32_0 = arith.constant 0 : i32
    %c0_i32_1 = arith.constant 0 : i32
    return %c0_i32, %c0_i32_0 : i32, i32
  }
  func.func @transform_5(%arg0: i32, %arg1: i32) -> (i32, i32, i32) {
    %c0_i32 = arith.constant 0 : i32
    %c0_i32_0 = arith.constant 0 : i32
    %c0_i32_1 = arith.constant 0 : i32
    return %arg1, %c0_i32, %c0_i32_0 : i32, i32, i32
  }
  func.func @transform_6(%arg0: i32, %arg1: i32) -> (i32, i32, i32) {
    %c0_i32 = arith.constant 0 : i32
    %c0_i32_0 = arith.constant 0 : i32
    %c0_i32_1 = arith.constant 0 : i32
    return %arg1, %c0_i32, %c0_i32_0 : i32, i32, i32
  }
  func.func @transform_7(%arg0: i32, %arg1: i32) -> (i32, i32, i32) {
    %c0_i32 = arith.constant 0 : i32
    %c0_i32_0 = arith.constant 0 : i32
    %c0_i32_1 = arith.constant 0 : i32
    return %arg1, %c0_i32, %c0_i32_0 : i32, i32, i32
  }
  func.func @transform_8(%arg0: i32, %arg1: i32) -> (i32, i32, i32) {
    %c0_i32 = arith.constant 0 : i32
    %c0_i32_0 = arith.constant 0 : i32
    %c0_i32_1 = arith.constant 0 : i32
    return %arg1, %c0_i32, %c0_i32_0 : i32, i32, i32
  }
  func.func @transform_9(%arg0: i32, %arg1: i32) -> (i32, i32, i32) {
    %c0_i32 = arith.constant 0 : i32
    %c0_i32_0 = arith.constant 0 : i32
    %c0_i32_1 = arith.constant 0 : i32
    return %arg1, %c0_i32, %c0_i32_0 : i32, i32, i32
  }
  func.func @transform_10(%arg0: i32, %arg1: i32) -> (i32, i32, i32) {
    %c0_i32 = arith.constant 0 : i32
    %c0_i32_0 = arith.constant 0 : i32
    %c0_i32_1 = arith.constant 0 : i32
    return %arg1, %c0_i32, %c0_i32_0 : i32, i32, i32
  }
  func.func @transform_11(%arg0: i32, %arg1: i32) -> (i32, i32, i32) {
    %c0_i32 = arith.constant 0 : i32
    %c0_i32_0 = arith.constant 0 : i32
    %c0_i32_1 = arith.constant 0 : i32
    return %arg1, %c0_i32, %c0_i32_0 : i32, i32, i32
  }
  func.func @transform_12(%arg0: i32, %arg1: i32) -> (i32, i32, i32) {
    %c0_i32 = arith.constant 0 : i32
    %c0_i32_0 = arith.constant 0 : i32
    %c0_i32_1 = arith.constant 0 : i32
    return %arg1, %c0_i32, %c0_i32_0 : i32, i32, i32
  }
  func.func @transform_13(%arg0: i32, %arg1: i32) -> (i32, i32, i32) {
    %c0_i32 = arith.constant 0 : i32
    %c0_i32_0 = arith.constant 0 : i32
    %c0_i32_1 = arith.constant 0 : i32
    return %arg1, %c0_i32, %c0_i32_0 : i32, i32, i32
  }
  func.func @transform_14(%arg0: i32, %arg1: i32) -> (i32, i32, i32) {
    %c0_i32 = arith.constant 0 : i32
    %c0_i32_0 = arith.constant 0 : i32
    %c0_i32_1 = arith.constant 0 : i32
    return %arg1, %c0_i32, %c0_i32_0 : i32, i32, i32
  }
  func.func @transform_15(%arg0: i32, %arg1: i32) -> (i32, i32, i32) {
    %c0_i32 = arith.constant 0 : i32
    %c0_i32_0 = arith.constant 0 : i32
    %c0_i32_1 = arith.constant 0 : i32
    return %arg1, %c0_i32, %c0_i32_0 : i32, i32, i32
  }
  func.func @transform_16(%arg0: i32, %arg1: i32) -> (i32, i32, i32) {
    %c0_i32 = arith.constant 0 : i32
    %c0_i32_0 = arith.constant 0 : i32
    %c0_i32_1 = arith.constant 0 : i32
    return %arg1, %c0_i32, %c0_i32_0 : i32, i32, i32
  }
  func.func @transform_17(%arg0: i32, %arg1: i32) -> (i32, i32) {
    %c0_i32 = arith.constant 0 : i32
    %c0_i32_0 = arith.constant 0 : i32
    %c0_i32_1 = arith.constant 0 : i32
    return %c0_i32, %c0_i32_0 : i32, i32
  }
  func.func @transform_18(%arg0: i32, %arg1: i32) -> (i32, i32) {
    %c0_i32 = arith.constant 0 : i32
    %c0_i32_0 = arith.constant 0 : i32
    %c0_i32_1 = arith.constant 0 : i32
    return %c0_i32, %c0_i32_0 : i32, i32
  }
  func.func @transform_19(%arg0: i32, %arg1: i32) -> (i32, i32, i32) {
    %c0_i32 = arith.constant 0 : i32
    %c0_i32_0 = arith.constant 0 : i32
    %c0_i32_1 = arith.constant 0 : i32
    return %arg0, %c0_i32, %c0_i32_0 : i32, i32, i32
  }
}

</mosaic_0001>

<llo_original>
// kernel: tpu_custom_call.1
$region0: #{tpu_custom_call.1}
  #allocation0 [shape = 'u32[]', space=smem, size = 0x4, offset = 0x4, fixed_abs, tag = 'smem constant byte address 0x4 - core index']
  #allocation1 [shape = 'u32[144,128]{1,0:T(1,128)}', space=vmem, size = 0x12000, scoped, tag = 'internal scratch']
  #allocation2 [shape = 'f32[8,32]{1,0:T(8,128)}', space=vmem, size = 0x1000, scoped, tag = 'scratch operand']
  %s0 = inlined_call_operand.hbm [shape: f32[2,8,32], index: 0, kind: input, shape index: {}]
  %s1 = inlined_call_operand.hbm [shape: f32[2,1,8], index: 1, kind: input, shape index: {}]
  %s2 = inlined_call_operand.vmem [shape: f32[2,8,1], index: 2, kind: input, shape index: {}]
  %s3 = inlined_call_operand.hbm [shape: f32[1,32], index: 3, kind: input, shape index: {}]
  %s4 = inlined_call_operand.hbm [shape: f32[1,32], index: 4, kind: input, shape index: {}]
  %s5 = inlined_call_operand.vmem [shape: f32[2,32,96], index: 5, kind: input, shape index: {}]
  %s6 = inlined_call_operand.hbm [shape: f32[2,1,96], index: 6, kind: input, shape index: {}]
  %s7 = inlined_call_operand.vmem [shape: f32[2,32,32], index: 7, kind: input, shape index: {}]
  %s8 = inlined_call_operand.hbm [shape: f32[2,1,32], index: 8, kind: input, shape index: {}]
  %s9 = inlined_call_operand.hbm [shape: f32[2,1,32], index: 9, kind: input, shape index: {}]
  %s10 = inlined_call_operand.vmem [shape: f32[2,1,32], index: 10, kind: input, shape index: {}]
  %s11 = inlined_call_operand.vmem [shape: f32[2,32,64], index: 11, kind: input, shape index: {}]
  %s12 = inlined_call_operand.vmem [shape: f32[2,1,64], index: 12, kind: input, shape index: {}]
  %s13 = inlined_call_operand.vmem [shape: f32[2,64,32], index: 13, kind: input, shape index: {}]
  %s14 = inlined_call_operand.vmem [shape: f32[2,1,32], index: 14, kind: input, shape index: {}]
  %s15 = inlined_call_operand.vmem [shape: f32[2,1,32], index: 15, kind: input, shape index: {}]
  %s16 = inlined_call_operand.vmem [shape: f32[2,1,32], index: 16, kind: input, shape index: {}]
  %s17 = inlined_call_operand.vmem [shape: f32[32,128], index: 17, kind: input, shape index: {}]
  %s18 = inlined_call_operand.vmem [shape: f32[1,128], index: 18, kind: input, shape index: {}]
  %s19 = inlined_call_operand.hbm [shape: f32[2,1,128], index: 19, kind: output, shape index: {}]
  %s20 = sld [smem:[#allocation0]]
  $region145: #{tpu_custom_call.1} parent=0
    _
  %s22 = ssub.s32 1, %s20
  %s23 = scalar_select 0, %s22, %s20
  $region1: #{tpu_custom_call.1} parent=0
    #allocation3 [shape = 'u8[8192]{0}', space=vmem, size = 0x2000, scoped, tag = 'input window, operand 0']
    #allocation4 [shape = 's32[2]{0}', space=sflag, size = 0x8, scoped, tag = 'scoped memory for tpu_custom_call.1']
    #allocation5 [shape = 's32[2]{0}', space=sflag, size = 0x8, scoped, tag = 'scoped memory for tpu_custom_call.1']
    #allocation6 [shape = 'u8[1024]{0}', space=vmem, size = 0x400, scoped, tag = 'input window, operand 1']
    #allocation7 [shape = 's32[2]{0}', space=sflag, size = 0x8, scoped, tag = 'scoped memory for tpu_custom_call.1']
    #allocation8 [shape = 'u8[512]{0}', space=vmem, size = 0x400, scoped, tag = 'input window, operand 3, single buffered']
    #allocation9 [shape = 'u8[512]{0}', space=vmem, size = 0x400, scoped, tag = 'input window, operand 4, single buffered']
    #allocation10 [shape = 's32[1]{0}', space=sflag, size = 0x4, scoped, tag = 'scoped memory for tpu_custom_call.1']
    #allocation11 [shape = 'u8[1024]{0}', space=vmem, size = 0x400, scoped, tag = 'input window, operand 6']
    #allocation12 [shape = 'u8[1024]{0}', space=vmem, size = 0x400, scoped, tag = 'input window, operand 8']
    #allocation13 [shape = 'u8[1024]{0}', space=vmem, size = 0x400, scoped, tag = 'input window, operand 9']
    #allocation14 [shape = 'u8[1024]{0}', space=vmem, size = 0x400, scoped, tag = 'output window, operand 0']
    %24 = vsyncpa [#allocation4], 0
    %s25 = scalar_lea.sflag [#allocation4], 1
    %26 = vsyncpa %s25, 0
    %27 = vsyncpa [#allocation7], 0
    %s28 = scalar_lea.sflag [#allocation7], 1
    %29 = vsyncpa %s28, 0
    %30 = vsyncpa [#allocation10], 0
    %31 = vsyncpa [#allocation5], 0
    %s32 = scalar_lea.sflag [#allocation5], 1
    %33 = vsyncpa %s32, 0
    loop: start=0, step=1, limit=6
    $region2: #{tpu_custom_call.1} parent=1 // loop_pre_header
      _
    $region3: #{tpu_custom_call.1} parent=1 // loop_header
      %s35 = sphi 0, %s39
      %p36 = scmp.ge.s32.totalorder %s35, 6
      %s42 = sphi 0, %s54
      %s43 = sphi 0, %s50
      %s44 = sphi 0, %s42
      %s45 = sphi 0, %s43
      %s46 = sphi 0, %s44
      %s47 = sphi 0, %s45
      %s57 = sphi 0, %s59
      %s60 = sphi 0, %s57
      %s61 = sphi 0, %s60
      %s77 = sphi 0, %s61
      %s83 = sphi 0, %s85
      %s86 = sphi 0, %s83
      %s87 = sphi 0, %s86
      %s103 = sphi 0, %s87
      %s109 = sphi 0, %s111
      %s112 = sphi 0, %s109
      %s113 = sphi 0, %s112
      %s129 = sphi 0, %s113
      %s133 = sphi 0, %s133
      %s135 = sphi 0, %s133
      %s136 = sphi 0, %s135
      %s150 = sphi 0, %s136
      %s154 = sphi 0, %s154
      %s156 = sphi 0, %s154
      %s157 = sphi 0, %s156
      %s171 = sphi 0, %s157
      %s177 = sphi 0, %s179
      %s180 = sphi 0, %s177
      %s181 = sphi 0, %s180
      %s197 = sphi 0, %s181
      %s203 = sphi 0, %s205
      %s206 = sphi 0, %s203
      %s207 = sphi 0, %s206
      %s223 = sphi 0, %s207
      %s229 = sphi 0, %s231
      %s232 = sphi 0, %s229
      %s233 = sphi 0, %s232
      %s249 = sphi 0, %s233
      %s255 = sphi 0, %s257
      %s258 = sphi 0, %s255
      %s259 = sphi 0, %s258
      %s275 = sphi 0, %s259
      %s281 = sphi 0, %s283
      %s284 = sphi 0, %s281
      %s285 = sphi 0, %s284
      %s301 = sphi 0, %s285
      %s307 = sphi 0, %s309
      %s310 = sphi 0, %s307
      %s311 = sphi 0, %s310
      %s327 = sphi 0, %s311
      %s333 = sphi 0, %s335
      %s336 = sphi 0, %s333
      %s337 = sphi 0, %s336
      %s353 = sphi 0, %s337
      %s359 = sphi 0, %s361
      %s362 = sphi 0, %s359
      %s363 = sphi 0, %s362
      %s379 = sphi 0, %s363
      %s385 = sphi 0, %s387
      %s388 = sphi 0, %s385
      %s389 = sphi 0, %s388
      %s405 = sphi 0, %s389
      %s411 = sphi 0, %s413
      %s414 = sphi 0, %s411
      %s415 = sphi 0, %s414
      %s431 = sphi 0, %s415
      %s437 = sphi 0, %s439
      %s440 = sphi 0, %s437
      %s441 = sphi 0, %s440
      %s457 = sphi 0, %s441
      %s463 = sphi 0, %s465
      %s466 = sphi 0, %s463
      %s467 = sphi 0, %s466
      %s483 = sphi 0, %s467
      %s487 = sphi 0, %s487
      %s489 = sphi 0, %s487
      %s490 = sphi 0, %s489
      %s504 = sphi 0, %s490
      %s508 = sphi 0, %s508
      %s510 = sphi 0, %s508
      %s511 = sphi 0, %s510
      %s525 = sphi 0, %s511
      %s531 = sphi 0, %s533
      %s534 = sphi 0, %s531
      %s535 = sphi 0, %s534
      %s551 = sphi 0, %s535
    $region4: #{tpu_custom_call.1} parent=1 // loop_header_branch
      %38 = sbr.rel (%p36) target = $region8
    $region5: #{tpu_custom_call.1} parent=1 // loop_body
      %s40 = ssub.s32 %s35, 1
      %s41 = ssub.s32 %s35, 2
      %s48 = sadd.s32 1, %s43
      %p49 = scmp.ge.s32.totalorder %s48, 2
      %s50 = scalar_select %p49, 0, %s48
      %s51 = sadd.s32 1, %s42
      %s52 = scalar_select %p49, %s51, %s42
      %p53 = scmp.ge.s32.totalorder %s52, 2
      %s54 = scalar_select %p53, 0, %s52
      %s55 = ssub.s32 %s42, %s54
      %p56 = scmp.eq.s32.totalorder %s55, 0
      %s58 = sadd.s32 %s57, 1
      %s59 = scalar_select %p56, %s57, %s58
      %p62 = pneg %p56
      %p63 = scmp.eq.s32.totalorder %s35, 3
      %p64 = por %p62, %p63
      %p65 = scmp.ne.s32.totalorder %s57, %s60
      %p66 = scmp.eq.s32.totalorder %s35, 0
      %p67 = por %p65, %p66
      %p68 = scmp.ne.s32.totalorder %s57, %s60
      %p69 = scmp.eq.s32.totalorder %s40, 3
      %p70 = por %p68, %p69
      %p71 = scmp.ne.s32.totalorder %s60, %s61
      %p72 = scmp.eq.s32.totalorder %s40, 0
      %p73 = por %p71, %p72
      %p74 = scmp.ne.s32.totalorder %s60, %s61
      %p75 = scmp.eq.s32.totalorder %s41, 3
      %p76 = por %p74, %p75
      %p78 = scmp.ne.s32.totalorder %s61, %s77
      %p79 = scmp.eq.s32.totalorder %s41, 0
      %p80 = por %p78, %p79
      %s81 = ssub.s32 %s42, %s54
      %p82 = scmp.eq.s32.totalorder %s81, 0
      %s84 = sadd.s32 %s83, 1
      %s85 = scalar_select %p82, %s83, %s84
      %p88 = pneg %p82
      %p89 = scmp.eq.s32.totalorder %s35, 3
      %p90 = por %p88, %p89
      %p91 = scmp.ne.s32.totalorder %s83, %s86
      %p92 = scmp.eq.s32.totalorder %s35, 0
      %p93 = por %p91, %p92
      %p94 = scmp.ne.s32.totalorder %s83, %s86
      %p95 = scmp.eq.s32.totalorder %s40, 3
      %p96 = por %p94, %p95
      %p97 = scmp.ne.s32.totalorder %s86, %s87
      %p98 = scmp.eq.s32.totalorder %s40, 0
      %p99 = por %p97, %p98
      %p100 = scmp.ne.s32.totalorder %s86, %s87
      %p101 = scmp.eq.s32.totalorder %s41, 3
      %p102 = por %p100, %p101
      %p104 = scmp.ne.s32.totalorder %s87, %s103
      %p105 = scmp.eq.s32.totalorder %s41, 0
      %p106 = por %p104, %p105
      %s107 = ssub.s32 %s42, %s54
      %p108 = scmp.eq.s32.totalorder %s107, 0
      %s110 = sadd.s32 %s109, 1
      %s111 = scalar_select %p108, %s109, %s110
      %p114 = pneg %p108
      %p115 = scmp.eq.s32.totalorder %s35, 3
      %p116 = por %p114, %p115
      %p117 = scmp.ne.s32.totalorder %s109, %s112
      %p118 = scmp.eq.s32.totalorder %s35, 0
      %p119 = por %p117, %p118
      %p120 = scmp.ne.s32.totalorder %s109, %s112
      %p121 = scmp.eq.s32.totalorder %s40, 3
      %p122 = por %p120, %p121
      %p123 = scmp.ne.s32.totalorder %s112, %s113
      %p124 = scmp.eq.s32.totalorder %s40, 0
      %p125 = por %p123, %p124
      %p126 = scmp.ne.s32.totalorder %s112, %s113
      %p127 = scmp.eq.s32.totalorder %s41, 3
      %p128 = por %p126, %p127
      %p130 = scmp.ne.s32.totalorder %s113, %s129
      %p131 = scmp.eq.s32.totalorder %s41, 0
      %p132 = por %p130, %p131
      %s134 = sadd.s32 %s133, 1
      %p137 = scmp.eq.s32.totalorder %s35, 3
      %p138 = scmp.ne.s32.totalorder %s133, %s135
      %p139 = scmp.eq.s32.totalorder %s35, 0
      %p140 = por %p138, %p139
      %p141 = scmp.ne.s32.totalorder %s133, %s135
      %p142 = scmp.eq.s32.totalorder %s40, 3
      %p143 = por %p141, %p142
      %p144 = scmp.ne.s32.totalorder %s135, %s136
      %p145 = scmp.eq.s32.totalorder %s40, 0
      %p146 = por %p144, %p145
      %p147 = scmp.ne.s32.totalorder %s135, %s136
      %p148 = scmp.eq.s32.totalorder %s41, 3
      %p149 = por %p147, %p148
      %p151 = scmp.ne.s32.totalorder %s136, %s150
      %p152 = scmp.eq.s32.totalorder %s41, 0
      %p153 = por %p151, %p152
      %s155 = sadd.s32 %s154, 1
      %p158 = scmp.eq.s32.totalorder %s35, 3
      %p159 = scmp.ne.s32.totalorder %s154, %s156
      %p160 = scmp.eq.s32.totalorder %s35, 0
      %p161 = por %p159, %p160
      %p162 = scmp.ne.s32.totalorder %s154, %s156
      %p163 = scmp.eq.s32.totalorder %s40, 3
      %p164 = por %p162, %p163
      %p165 = scmp.ne.s32.totalorder %s156, %s157
      %p166 = scmp.eq.s32.totalorder %s40, 0
      %p167 = por %p165, %p166
      %p168 = scmp.ne.s32.totalorder %s156, %s157
      %p169 = scmp.eq.s32.totalorder %s41, 3
      %p170 = por %p168, %p169
      %p172 = scmp.ne.s32.totalorder %s157, %s171
      %p173 = scmp.eq.s32.totalorder %s41, 0
      %p174 = por %p172, %p173
      %s175 = ssub.s32 %s43, %s50
      %p176 = scmp.eq.s32.totalorder %s175, 0
      %s178 = sadd.s32 %s177, 1
      %s179 = scalar_select %p176, %s177, %s178
      %p182 = pneg %p176
      %p183 = scmp.eq.s32.totalorder %s35, 3
      %p184 = por %p182, %p183
      %p185 = scmp.ne.s32.totalorder %s177, %s180
      %p186 = scmp.eq.s32.totalorder %s35, 0
      %p187 = por %p185, %p186
      %p188 = scmp.ne.s32.totalorder %s177, %s180
      %p189 = scmp.eq.s32.totalorder %s40, 3
      %p190 = por %p188, %p189
      %p191 = scmp.ne.s32.totalorder %s180, %s181
      %p192 = scmp.eq.s32.totalorder %s40, 0
      %p193 = por %p191, %p192
      %p194 = scmp.ne.s32.totalorder %s180, %s181
      %p195 = scmp.eq.s32.totalorder %s41, 3
      %p196 = por %p194, %p195
      %p198 = scmp.ne.s32.totalorder %s181, %s197
      %p199 = scmp.eq.s32.totalorder %s41, 0
      %p200 = por %p198, %p199
      %s201 = ssub.s32 %s43, %s50
      %p202 = scmp.eq.s32.totalorder %s201, 0
      %s204 = sadd.s32 %s203, 1
      %s205 = scalar_select %p202, %s203, %s204
      %p208 = pneg %p202
      %p209 = scmp.eq.s32.totalorder %s35, 3
      %p210 = por %p208, %p209
      %p211 = scmp.ne.s32.totalorder %s203, %s206
      %p212 = scmp.eq.s32.totalorder %s35, 0
      %p213 = por %p211, %p212
      %p214 = scmp.ne.s32.totalorder %s203, %s206
      %p215 = scmp.eq.s32.totalorder %s40, 3
      %p216 = por %p214, %p215
      %p217 = scmp.ne.s32.totalorder %s206, %s207
      %p218 = scmp.eq.s32.totalorder %s40, 0
      %p219 = por %p217, %p218
      %p220 = scmp.ne.s32.totalorder %s206, %s207
      %p221 = scmp.eq.s32.totalorder %s41, 3
      %p222 = por %p220, %p221
      %p224 = scmp.ne.s32.totalorder %s207, %s223
      %p225 = scmp.eq.s32.totalorder %s41, 0
      %p226 = por %p224, %p225
      %s227 = ssub.s32 %s43, %s50
      %p228 = scmp.eq.s32.totalorder %s227, 0
      %s230 = sadd.s32 %s229, 1
      %s231 = scalar_select %p228, %s229, %s230
      %p234 = pneg %p228
      %p235 = scmp.eq.s32.totalorder %s35, 3
      %p236 = por %p234, %p235
      %p237 = scmp.ne.s32.totalorder %s229, %s232
      %p238 = scmp.eq.s32.totalorder %s35, 0
      %p239 = por %p237, %p238
      %p240 = scmp.ne.s32.totalorder %s229, %s232
      %p241 = scmp.eq.s32.totalorder %s40, 3
      %p242 = por %p240, %p241
      %p243 = scmp.ne.s32.totalorder %s232, %s233
      %p244 = scmp.eq.s32.totalorder %s40, 0
      %p245 = por %p243, %p244
      %p246 = scmp.ne.s32.totalorder %s232, %s233
      %p247 = scmp.eq.s32.totalorder %s41, 3
      %p248 = por %p246, %p247
      %p250 = scmp.ne.s32.totalorder %s233, %s249
      %p251 = scmp.eq.s32.totalorder %s41, 0
      %p252 = por %p250, %p251
      %s253 = ssub.s32 %s43, %s50
      %p254 = scmp.eq.s32.totalorder %s253, 0
      %s256 = sadd.s32 %s255, 1
      %s257 = scalar_select %p254, %s255, %s256
      %p260 = pneg %p254
      %p261 = scmp.eq.s32.totalorder %s35, 3
      %p262 = por %p260, %p261
      %p263 = scmp.ne.s32.totalorder %s255, %s258
      %p264 = scmp.eq.s32.totalorder %s35, 0
      %p265 = por %p263, %p264
      %p266 = scmp.ne.s32.totalorder %s255, %s258
      %p267 = scmp.eq.s32.totalorder %s40, 3
      %p268 = por %p266, %p267
      %p269 = scmp.ne.s32.totalorder %s258, %s259
      %p270 = scmp.eq.s32.totalorder %s40, 0
      %p271 = por %p269, %p270
      %p272 = scmp.ne.s32.totalorder %s258, %s259
      %p273 = scmp.eq.s32.totalorder %s41, 3
      %p274 = por %p272, %p273
      %p276 = scmp.ne.s32.totalorder %s259, %s275
      %p277 = scmp.eq.s32.totalorder %s41, 0
      %p278 = por %p276, %p277
      %s279 = ssub.s32 %s43, %s50
      %p280 = scmp.eq.s32.totalorder %s279, 0
      %s282 = sadd.s32 %s281, 1
      %s283 = scalar_select %p280, %s281, %s282
      %p286 = pneg %p280
      %p287 = scmp.eq.s32.totalorder %s35, 3
      %p288 = por %p286, %p287
      %p289 = scmp.ne.s32.totalorder %s281, %s284
      %p290 = scmp.eq.s32.totalorder %s35, 0
      %p291 = por %p289, %p290
      %p292 = scmp.ne.s32.totalorder %s281, %s284
      %p293 = scmp.eq.s32.totalorder %s40, 3
      %p294 = por %p292, %p293
      %p295 = scmp.ne.s32.totalorder %s284, %s285
      %p296 = scmp.eq.s32.totalorder %s40, 0
      %p297 = por %p295, %p296
      %p298 = scmp.ne.s32.totalorder %s284, %s285
      %p299 = scmp.eq.s32.totalorder %s41, 3
      %p300 = por %p298, %p299
      %p302 = scmp.ne.s32.totalorder %s285, %s301
      %p303 = scmp.eq.s32.totalorder %s41, 0
      %p304 = por %p302, %p303
      %s305 = ssub.s32 %s43, %s50
      %p306 = scmp.eq.s32.totalorder %s305, 0
      %s308 = sadd.s32 %s307, 1
      %s309 = scalar_select %p306, %s307, %s308
      %p312 = pneg %p306
      %p313 = scmp.eq.s32.totalorder %s35, 3
      %p314 = por %p312, %p313
      %p315 = scmp.ne.s32.totalorder %s307, %s310
      %p316 = scmp.eq.s32.totalorder %s35, 0
      %p317 = por %p315, %p316
      %p318 = scmp.ne.s32.totalorder %s307, %s310
      %p319 = scmp.eq.s32.totalorder %s40, 3
      %p320 = por %p318, %p319
      %p321 = scmp.ne.s32.totalorder %s310, %s311
      %p322 = scmp.eq.s32.totalorder %s40, 0
      %p323 = por %p321, %p322
      %p324 = scmp.ne.s32.totalorder %s310, %s311
      %p325 = scmp.eq.s32.totalorder %s41, 3
      %p326 = por %p324, %p325
      %p328 = scmp.ne.s32.totalorder %s311, %s327
      %p329 = scmp.eq.s32.totalorder %s41, 0
      %p330 = por %p328, %p329
      %s331 = ssub.s32 %s43, %s50
      %p332 = scmp.eq.s32.totalorder %s331, 0
      %s334 = sadd.s32 %s333, 1
      %s335 = scalar_select %p332, %s333, %s334
      %p338 = pneg %p332
      %p339 = scmp.eq.s32.totalorder %s35, 3
      %p340 = por %p338, %p339
      %p341 = scmp.ne.s32.totalorder %s333, %s336
      %p342 = scmp.eq.s32.totalorder %s35, 0
      %p343 = por %p341, %p342
      %p344 = scmp.ne.s32.totalorder %s333, %s336
      %p345 = scmp.eq.s32.totalorder %s40, 3
      %p346 = por %p344, %p345
      %p347 = scmp.ne.s32.totalorder %s336, %s337
      %p348 = scmp.eq.s32.totalorder %s40, 0
      %p349 = por %p347, %p348
      %p350 = scmp.ne.s32.totalorder %s336, %s337
      %p351 = scmp.eq.s32.totalorder %s41, 3
      %p352 = por %p350, %p351
      %p354 = scmp.ne.s32.totalorder %s337, %s353
      %p355 = scmp.eq.s32.totalorder %s41, 0
      %p356 = por %p354, %p355
      %s357 = ssub.s32 %s43, %s50
      %p358 = scmp.eq.s32.totalorder %s357, 0
      %s360 = sadd.s32 %s359, 1
      %s361 = scalar_select %p358, %s359, %s360
      %p364 = pneg %p358
      %p365 = scmp.eq.s32.totalorder %s35, 3
      %p366 = por %p364, %p365
      %p367 = scmp.ne.s32.totalorder %s359, %s362
      %p368 = scmp.eq.s32.totalorder %s35, 0
      %p369 = por %p367, %p368
      %p370 = scmp.ne.s32.totalorder %s359, %s362
      %p371 = scmp.eq.s32.totalorder %s40, 3
      %p372 = por %p370, %p371
      %p373 = scmp.ne.s32.totalorder %s362, %s363
      %p374 = scmp.eq.s32.totalorder %s40, 0
      %p375 = por %p373, %p374
      %p376 = scmp.ne.s32.totalorder %s362, %s363
      %p377 = scmp.eq.s32.totalorder %s41, 3
      %p378 = por %p376, %p377
      %p380 = scmp.ne.s32.totalorder %s363, %s379
      %p381 = scmp.eq.s32.totalorder %s41, 0
      %p382 = por %p380, %p381
      %s383 = ssub.s32 %s43, %s50
      %p384 = scmp.eq.s32.totalorder %s383, 0
      %s386 = sadd.s32 %s385, 1
      %s387 = scalar_select %p384, %s385, %s386
      %p390 = pneg %p384
      %p391 = scmp.eq.s32.totalorder %s35, 3
      %p392 = por %p390, %p391
      %p393 = scmp.ne.s32.totalorder %s385, %s388
      %p394 = scmp.eq.s32.totalorder %s35, 0
      %p395 = por %p393, %p394
      %p396 = scmp.ne.s32.totalorder %s385, %s388
      %p397 = scmp.eq.s32.totalorder %s40, 3
      %p398 = por %p396, %p397
      %p399 = scmp.ne.s32.totalorder %s388, %s389
      %p400 = scmp.eq.s32.totalorder %s40, 0
      %p401 = por %p399, %p400
      %p402 = scmp.ne.s32.totalorder %s388, %s389
      %p403 = scmp.eq.s32.totalorder %s41, 3
      %p404 = por %p402, %p403
      %p406 = scmp.ne.s32.totalorder %s389, %s405
      %p407 = scmp.eq.s32.totalorder %s41, 0
      %p408 = por %p406, %p407
      %s409 = ssub.s32 %s43, %s50
      %p410 = scmp.eq.s32.totalorder %s409, 0
      %s412 = sadd.s32 %s411, 1
      %s413 = scalar_select %p410, %s411, %s412
      %p416 = pneg %p410
      %p417 = scmp.eq.s32.totalorder %s35, 3
      %p418 = por %p416, %p417
      %p419 = scmp.ne.s32.totalorder %s411, %s414
      %p420 = scmp.eq.s32.totalorder %s35, 0
      %p421 = por %p419, %p420
      %p422 = scmp.ne.s32.totalorder %s411, %s414
      %p423 = scmp.eq.s32.totalorder %s40, 3
      %p424 = por %p422, %p423
      %p425 = scmp.ne.s32.totalorder %s414, %s415
      %p426 = scmp.eq.s32.totalorder %s40, 0
      %p427 = por %p425, %p426
      %p428 = scmp.ne.s32.totalorder %s414, %s415
      %p429 = scmp.eq.s32.totalorder %s41, 3
      %p430 = por %p428, %p429
      %p432 = scmp.ne.s32.totalorder %s415, %s431
      %p433 = scmp.eq.s32.totalorder %s41, 0
      %p434 = por %p432, %p433
      %s435 = ssub.s32 %s43, %s50
      %p436 = scmp.eq.s32.totalorder %s435, 0
      %s438 = sadd.s32 %s437, 1
      %s439 = scalar_select %p436, %s437, %s438
      %p442 = pneg %p436
      %p443 = scmp.eq.s32.totalorder %s35, 3
      %p444 = por %p442, %p443
      %p445 = scmp.ne.s32.totalorder %s437, %s440
      %p446 = scmp.eq.s32.totalorder %s35, 0
      %p447 = por %p445, %p446
      %p448 = scmp.ne.s32.totalorder %s437, %s440
      %p449 = scmp.eq.s32.totalorder %s40, 3
      %p450 = por %p448, %p449
      %p451 = scmp.ne.s32.totalorder %s440, %s441
      %p452 = scmp.eq.s32.totalorder %s40, 0
      %p453 = por %p451, %p452
      %p454 = scmp.ne.s32.totalorder %s440, %s441
      %p455 = scmp.eq.s32.totalorder %s41, 3
      %p456 = por %p454, %p455
      %p458 = scmp.ne.s32.totalorder %s441, %s457
      %p459 = scmp.eq.s32.totalorder %s41, 0
      %p460 = por %p458, %p459
      %s461 = ssub.s32 %s43, %s50
      %p462 = scmp.eq.s32.totalorder %s461, 0
      %s464 = sadd.s32 %s463, 1
      %s465 = scalar_select %p462, %s463, %s464
      %p468 = pneg %p462
      %p469 = scmp.eq.s32.totalorder %s35, 3
      %p470 = por %p468, %p469
      %p471 = scmp.ne.s32.totalorder %s463, %s466
      %p472 = scmp.eq.s32.totalorder %s35, 0
      %p473 = por %p471, %p472
      %p474 = scmp.ne.s32.totalorder %s463, %s466
      %p475 = scmp.eq.s32.totalorder %s40, 3
      %p476 = por %p474, %p475
      %p477 = scmp.ne.s32.totalorder %s466, %s467
      %p478 = scmp.eq.s32.totalorder %s40, 0
      %p479 = por %p477, %p478
      %p480 = scmp.ne.s32.totalorder %s466, %s467
      %p481 = scmp.eq.s32.totalorder %s41, 3
      %p482 = por %p480, %p481
      %p484 = scmp.ne.s32.totalorder %s467, %s483
      %p485 = scmp.eq.s32.totalorder %s41, 0
      %p486 = por %p484, %p485
      %s488 = sadd.s32 %s487, 1
      %p491 = scmp.eq.s32.totalorder %s35, 3
      %p492 = scmp.ne.s32.totalorder %s487, %s489
      %p493 = scmp.eq.s32.totalorder %s35, 0
      %p494 = por %p492, %p493
      %p495 = scmp.ne.s32.totalorder %s487, %s489
      %p496 = scmp.eq.s32.totalorder %s40, 3
      %p497 = por %p495, %p496
      %p498 = scmp.ne.s32.totalorder %s489, %s490
      %p499 = scmp.eq.s32.totalorder %s40, 0
      %p500 = por %p498, %p499
      %p501 = scmp.ne.s32.totalorder %s489, %s490
      %p502 = scmp.eq.s32.totalorder %s41, 3
      %p503 = por %p501, %p502
      %p505 = scmp.ne.s32.totalorder %s490, %s504
      %p506 = scmp.eq.s32.totalorder %s41, 0
      %p507 = por %p505, %p506
      %s509 = sadd.s32 %s508, 1
      %p512 = scmp.eq.s32.totalorder %s35, 3
      %p513 = scmp.ne.s32.totalorder %s508, %s510
      %p514 = scmp.eq.s32.totalorder %s35, 0
      %p515 = por %p513, %p514
      %p516 = scmp.ne.s32.totalorder %s508, %s510
      %p517 = scmp.eq.s32.totalorder %s40, 3
      %p518 = por %p516, %p517
      %p519 = scmp.ne.s32.totalorder %s510, %s511
      %p520 = scmp.eq.s32.totalorder %s40, 0
      %p521 = por %p519, %p520
      %p522 = scmp.ne.s32.totalorder %s510, %s511
      %p523 = scmp.eq.s32.totalorder %s41, 3
      %p524 = por %p522, %p523
      %p526 = scmp.ne.s32.totalorder %s511, %s525
      %p527 = scmp.eq.s32.totalorder %s41, 0
      %p528 = por %p526, %p527
      %s529 = ssub.s32 %s42, %s54
      %p530 = scmp.eq.s32.totalorder %s529, 0
      %s532 = sadd.s32 %s531, 1
      %s533 = scalar_select %p530, %s531, %s532
      %p536 = pneg %p530
      %p537 = scmp.eq.s32.totalorder %s35, 3
      %p538 = por %p536, %p537
      %p539 = scmp.ne.s32.totalorder %s531, %s534
      %p540 = scmp.eq.s32.totalorder %s35, 0
      %p541 = por %p539, %p540
      %p542 = scmp.ne.s32.totalorder %s531, %s534
      %p543 = scmp.eq.s32.totalorder %s40, 3
      %p544 = por %p542, %p543
      %p545 = scmp.ne.s32.totalorder %s534, %s535
      %p546 = scmp.eq.s32.totalorder %s40, 0
      %p547 = por %p545, %p546
      %p548 = scmp.ne.s32.totalorder %s534, %s535
      %p549 = scmp.eq.s32.totalorder %s41, 3
      %p550 = por %p548, %p549
      %p552 = scmp.ne.s32.totalorder %s535, %s551
      %p553 = scmp.eq.s32.totalorder %s41, 0
      %p554 = por %p552, %p553
      %p555 = scmp.le.s32.totalorder 1, %s35
      %p556 = scmp.lt.s32.totalorder %s35, 5
      %p557 = pnand %p555, %p556
      %p558 = pneg %p557
      // Predicated region
      $region9: #{tpu_custom_call.1} parent=5 // pred_check
        _
      $region10: #{tpu_custom_call.1} parent=5 // pred_check_branch
        %560 = sbr.rel (%p557) target = $region12
      $region11: #{tpu_custom_call.1} parent=5 // pred_region
        %s561 = ssub.s32 %s35, 1
        // Predicated region
        $region13: #{tpu_custom_call.1} parent=11 // pred_check
          %p562 = pneg %p146
        $region14: #{tpu_custom_call.1} parent=11 // pred_check_branch
          %564 = sbr.rel (%p562) target = $region16
        $region15: #{tpu_custom_call.1} parent=11 // pred_region
          %s566 = ssub.s32 16, 16
          %567 = vsyncadd [#allocation7], %s566
          %s569 = sshll.u32 [#allocation8], 4
          %s570 = int_to_ptr.vmem [resolvable:$true] %s569
          %572 = dma.hbm_to_vmem [thread:$0]  %s3, 16, %s570, [#allocation7]
        $region16: #{tpu_custom_call.1} parent=11 // pred_fallthru
          _
        // Predicated region
        $region17: #{tpu_custom_call.1} parent=11 // pred_check
          %p573 = pneg %p167
        $region18: #{tpu_custom_call.1} parent=11 // pred_check_branch
          %575 = sbr.rel (%p573) target = $region20
        $region19: #{tpu_custom_call.1} parent=11 // pred_region
          %s577 = ssub.s32 16, 16
          %578 = vsyncadd [#allocation10], %s577
          %s580 = sshll.u32 [#allocation9], 4
          %s581 = int_to_ptr.vmem [resolvable:$true] %s580
          %583 = dma.hbm_to_vmem [thread:$0]  %s4, 16, %s581, [#allocation10]
        $region20: #{tpu_custom_call.1} parent=11 // pred_fallthru
          _
        // Predicated region
        $region21: #{tpu_custom_call.1} parent=11 // pred_check
          %p584 = pneg %p500
        $region22: #{tpu_custom_call.1} parent=11 // pred_check_branch
          %586 = sbr.rel (%p584) target = $region24
        $region23: #{tpu_custom_call.1} parent=11 // pred_region
          _
        $region24: #{tpu_custom_call.1} parent=11 // pred_fallthru
          _
        // Predicated region
        $region25: #{tpu_custom_call.1} parent=11 // pred_check
          %p587 = pneg %p521
        $region26: #{tpu_custom_call.1} parent=11 // pred_check_branch
          %589 = sbr.rel (%p587) target = $region28
        $region27: #{tpu_custom_call.1} parent=11 // pred_region
          _
        $region28: #{tpu_custom_call.1} parent=11 // pred_fallthru
          _
      $region12: #{tpu_custom_call.1} parent=5 // pred_fallthru
        _
      %p590 = scmp.lt.s32.totalorder %s35, 4
      // Predicated region
      $region29: #{tpu_custom_call.1} parent=5 // pred_check
        %p591 = pneg %p590
      $region30: #{tpu_custom_call.1} parent=5 // pred_check_branch
        %593 = sbr.rel (%p591) target = $region32
      $region31: #{tpu_custom_call.1} parent=5 // pred_region
        // Predicated region
        $region33: #{tpu_custom_call.1} parent=31 // pred_check
          %p594 = pneg %p67
        $region34: #{tpu_custom_call.1} parent=31 // pred_check_branch
          %596 = sbr.rel (%p594) target = $region36
        $region35: #{tpu_custom_call.1} parent=31 // pred_region
          %s597 = sand.u32 %s35, 1
          %s598 = scalar_lea.sflag [#allocation4], %s597
          %s599 = sand.u32 %s57, 1
          %s600 = smul.addr %s599, 8
          %s601 = scalar_lea.vmem [#allocation3], %s600
          %s603 = ssub.s32 128, 128
          %604 = vsyncadd %s598, %s603
          %s605 = smul.addr %s42, 128
          %s606 = scalar_lea.hbm %s0, %s605
          %s608 = sshll.u32 %s601, 4
          %s609 = int_to_ptr.vmem [resolvable:$true] %s608
          %611 = dma.hbm_to_vmem [thread:$0]  %s606, 128, %s609, %s598
        $region36: #{tpu_custom_call.1} parent=31 // pred_fallthru
          _
        // Predicated region
        $region37: #{tpu_custom_call.1} parent=31 // pred_check
          %p612 = pneg %p93
        $region38: #{tpu_custom_call.1} parent=31 // pred_check_branch
          %614 = sbr.rel (%p612) target = $region40
        $region39: #{tpu_custom_call.1} parent=31 // pred_region
          %s615 = sand.u32 %s35, 1
          %s616 = scalar_lea.sflag [#allocation7], %s615
          %s617 = sand.u32 %s83, 1
          %s618 = scalar_lea.vmem [#allocation6], %s617
          %s620 = ssub.s32 16, 16
          %621 = vsyncadd %s616, %s620
          %s622 = smul.addr %s42, 16
          %s623 = scalar_lea.hbm %s1, %s622
          %s625 = sshll.u32 %s618, 4
          %s626 = int_to_ptr.vmem [resolvable:$true] %s625
          %628 = dma.hbm_to_vmem [thread:$0]  %s623, 16, %s626, %s616
        $region40: #{tpu_custom_call.1} parent=31 // pred_fallthru
          _
        // Predicated region
        $region41: #{tpu_custom_call.1} parent=31 // pred_check
          %p629 = pneg %p119
        $region42: #{tpu_custom_call.1} parent=31 // pred_check_branch
          %631 = sbr.rel (%p629) target = $region44
        $region43: #{tpu_custom_call.1} parent=31 // pred_region
          %p632 = scmp.lt.s32.totalorder %s42, 1
          %s633 = scalar_select %p632, %s42, 1
          %s634 = smul.addr %s633, 8
          %s635 = scalar_lea.vmem %s2, %s634
        $region44: #{tpu_custom_call.1} parent=31 // pred_fallthru
          _
        // Predicated region
        $region45: #{tpu_custom_call.1} parent=31 // pred_check
          %p636 = pneg %p187
        $region46: #{tpu_custom_call.1} parent=31 // pred_check_branch
          %638 = sbr.rel (%p636) target = $region48
        $region47: #{tpu_custom_call.1} parent=31 // pred_region
          %p639 = scmp.lt.s32.totalorder %s43, 1
          %s640 = scalar_select %p639, %s43, 1
          %s641 = smul.addr %s640, 4
          %s642 = smul.addr %s641, 8
          %s643 = scalar_lea.vmem %s5, %s642
        $region48: #{tpu_custom_call.1} parent=31 // pred_fallthru
          _
        // Predicated region
        $region49: #{tpu_custom_call.1} parent=31 // pred_check
          %p644 = pneg %p213
        $region50: #{tpu_custom_call.1} parent=31 // pred_check_branch
          %646 = sbr.rel (%p644) target = $region52
        $region51: #{tpu_custom_call.1} parent=31 // pred_region
          %s647 = sand.u32 %s35, 1
          %s648 = scalar_lea.sflag [#allocation4], %s647
          %s649 = sand.u32 %s203, 1
          %s650 = scalar_lea.vmem [#allocation11], %s649
          %s652 = ssub.s32 16, 16
          %653 = vsyncadd %s648, %s652
          %s654 = smul.addr %s43, 16
          %s655 = scalar_lea.hbm %s6, %s654
          %s657 = sshll.u32 %s650, 4
          %s658 = int_to_ptr.vmem [resolvable:$true] %s657
          %660 = dma.hbm_to_vmem [thread:$0]  %s655, 16, %s658, %s648
        $region52: #{tpu_custom_call.1} parent=31 // pred_fallthru
          _
        // Predicated region
        $region53: #{tpu_custom_call.1} parent=31 // pred_check
          %p661 = pneg %p239
        $region54: #{tpu_custom_call.1} parent=31 // pred_check_branch
          %663 = sbr.rel (%p661) target = $region56
        $region55: #{tpu_custom_call.1} parent=31 // pred_region
          %p664 = scmp.lt.s32.totalorder %s43, 1
          %s665 = scalar_select %p664, %s43, 1
          %s666 = smul.addr %s665, 4
          %s667 = smul.addr %s666, 8
          %s668 = scalar_lea.vmem %s7, %s667
        $region56: #{tpu_custom_call.1} parent=31 // pred_fallthru
          _
        // Predicated region
        $region57: #{tpu_custom_call.1} parent=31 // pred_check
          %p669 = pneg %p265
        $region58: #{tpu_custom_call.1} parent=31 // pred_check_branch
          %671 = sbr.rel (%p669) target = $region60
        $region59: #{tpu_custom_call.1} parent=31 // pred_region
          %s672 = sand.u32 %s35, 1
          %s673 = scalar_lea.sflag [#allocation7], %s672
          %s674 = sand.u32 %s255, 1
          %s675 = scalar_lea.vmem [#allocation12], %s674
          %s677 = ssub.s32 16, 16
          %678 = vsyncadd %s673, %s677
          %s679 = smul.addr %s43, 16
          %s680 = scalar_lea.hbm %s8, %s679
          %s682 = sshll.u32 %s675, 4
          %s683 = int_to_ptr.vmem [resolvable:$true] %s682
          %685 = dma.hbm_to_vmem [thread:$0]  %s680, 16, %s683, %s673
        $region60: #{tpu_custom_call.1} parent=31 // pred_fallthru
          _
        // Predicated region
        $region61: #{tpu_custom_call.1} parent=31 // pred_check
          %p686 = pneg %p291
        $region62: #{tpu_custom_call.1} parent=31 // pred_check_branch
          %688 = sbr.rel (%p686) target = $region64
        $region63: #{tpu_custom_call.1} parent=31 // pred_region
          %s689 = sand.u32 %s35, 1
          %s690 = scalar_lea.sflag [#allocation4], %s689
          %s691 = sand.u32 %s281, 1
          %s692 = scalar_lea.vmem [#allocation13], %s691
          %s694 = ssub.s32 16, 16
          %695 = vsyncadd %s690, %s694
          %s696 = smul.addr %s43, 16
          %s697 = scalar_lea.hbm %s9, %s696
          %s699 = sshll.u32 %s692, 4
          %s700 = int_to_ptr.vmem [resolvable:$true] %s699
          %702 = dma.hbm_to_vmem [thread:$0]  %s697, 16, %s700, %s690
        $region64: #{tpu_custom_call.1} parent=31 // pred_fallthru
          _
        // Predicated region
        $region65: #{tpu_custom_call.1} parent=31 // pred_check
          %p703 = pneg %p317
        $region66: #{tpu_custom_call.1} parent=31 // pred_check_branch
          %705 = sbr.rel (%p703) target = $region68
        $region67: #{tpu_custom_call.1} parent=31 // pred_region
          %p706 = scmp.lt.s32.totalorder %s43, 1
          %s707 = scalar_select %p706, %s43, 1
          %s708 = scalar_lea.vmem %s10, %s707
        $region68: #{tpu_custom_call.1} parent=31 // pred_fallthru
          _
        // Predicated region
        $region69: #{tpu_custom_call.1} parent=31 // pred_check
          %p709 = pneg %p343
        $region70: #{tpu_custom_call.1} parent=31 // pred_check_branch
          %711 = sbr.rel (%p709) target = $region72
        $region71: #{tpu_custom_call.1} parent=31 // pred_region
          %p712 = scmp.lt.s32.totalorder %s43, 1
          %s713 = scalar_select %p712, %s43, 1
          %s714 = smul.addr %s713, 4
          %s715 = smul.addr %s714, 8
          %s716 = scalar_lea.vmem %s11, %s715
        $region72: #{tpu_custom_call.1} parent=31 // pred_fallthru
          _
        // Predicated region
        $region73: #{tpu_custom_call.1} parent=31 // pred_check
          %p717 = pneg %p369
        $region74: #{tpu_custom_call.1} parent=31 // pred_check_branch
          %719 = sbr.rel (%p717) target = $region76
        $region75: #{tpu_custom_call.1} parent=31 // pred_region
          %p720 = scmp.lt.s32.totalorder %s43, 1
          %s721 = scalar_select %p720, %s43, 1
          %s722 = scalar_lea.vmem %s12, %s721
        $region76: #{tpu_custom_call.1} parent=31 // pred_fallthru
          _
        // Predicated region
        $region77: #{tpu_custom_call.1} parent=31 // pred_check
          %p723 = pneg %p395
        $region78: #{tpu_custom_call.1} parent=31 // pred_check_branch
          %725 = sbr.rel (%p723) target = $region80
        $region79: #{tpu_custom_call.1} parent=31 // pred_region
          %p726 = scmp.lt.s32.totalorder %s43, 1
          %s727 = scalar_select %p726, %s43, 1
          %s728 = smul.addr %s727, 8
          %s729 = smul.addr %s728, 8
          %s730 = scalar_lea.vmem %s13, %s729
        $region80: #{tpu_custom_call.1} parent=31 // pred_fallthru
          _
        // Predicated region
        $region81: #{tpu_custom_call.1} parent=31 // pred_check
          %p731 = pneg %p421
        $region82: #{tpu_custom_call.1} parent=31 // pred_check_branch
          %733 = sbr.rel (%p731) target = $region84
        $region83: #{tpu_custom_call.1} parent=31 // pred_region
          %p734 = scmp.lt.s32.totalorder %s43, 1
          %s735 = scalar_select %p734, %s43, 1
          %s736 = scalar_lea.vmem %s14, %s735
        $region84: #{tpu_custom_call.1} parent=31 // pred_fallthru
          _
        // Predicated region
        $region85: #{tpu_custom_call.1} parent=31 // pred_check
          %p737 = pneg %p447
        $region86: #{tpu_custom_call.1} parent=31 // pred_check_branch
          %739 = sbr.rel (%p737) target = $region88
        $region87: #{tpu_custom_call.1} parent=31 // pred_region
          %p740 = scmp.lt.s32.totalorder %s43, 1
          %s741 = scalar_select %p740, %s43, 1
          %s742 = scalar_lea.vmem %s15, %s741
        $region88: #{tpu_custom_call.1} parent=31 // pred_fallthru
          _
        // Predicated region
        $region89: #{tpu_custom_call.1} parent=31 // pred_check
          %p743 = pneg %p473
        $region90: #{tpu_custom_call.1} parent=31 // pred_check_branch
          %745 = sbr.rel (%p743) target = $region92
        $region91: #{tpu_custom_call.1} parent=31 // pred_region
          %p746 = scmp.lt.s32.totalorder %s43, 1
          %s747 = scalar_select %p746, %s43, 1
          %s748 = scalar_lea.vmem %s16, %s747
        $region92: #{tpu_custom_call.1} parent=31 // pred_fallthru
          _
      $region32: #{tpu_custom_call.1} parent=5 // pred_fallthru
        _
      %p749 = scmp.le.s32.totalorder 1, %s35
      %p750 = scmp.lt.s32.totalorder %s35, 5
      %p751 = pnand %p749, %p750
      %p752 = pneg %p751
      // Predicated region
      $region93: #{tpu_custom_call.1} parent=5 // pred_check
        _
      $region94: #{tpu_custom_call.1} parent=5 // pred_check_branch
        %754 = sbr.rel (%p751) target = $region96
      $region95: #{tpu_custom_call.1} parent=5 // pred_region
        %s755 = ssub.s32 %s35, 1
        %s756 = sand.u32 %s40, 1
        %s757 = scalar_lea.sflag [#allocation4], %s756
        %s758 = sand.u32 %s60, 1
        %s759 = smul.addr %s758, 8
        %s760 = scalar_lea.vmem [#allocation3], %s759
        // Predicated region
        $region97: #{tpu_custom_call.1} parent=95 // pred_check
          %p761 = pneg %p73
        $region98: #{tpu_custom_call.1} parent=95 // pred_check_branch
          %763 = sbr.rel (%p761) target = $region100
        $region99: #{tpu_custom_call.1} parent=95 // pred_region
          %764 = dma.done %s757, 128
        $region100: #{tpu_custom_call.1} parent=95 // pred_fallthru
          _
        %s765 = sand.u32 %s40, 1
        %s766 = scalar_lea.sflag [#allocation7], %s765
        %s767 = sand.u32 %s86, 1
        %s768 = scalar_lea.vmem [#allocation6], %s767
        // Predicated region
        $region101: #{tpu_custom_call.1} parent=95 // pred_check
          %p769 = pneg %p99
        $region102: #{tpu_custom_call.1} parent=95 // pred_check_branch
          %771 = sbr.rel (%p769) target = $region104
        $region103: #{tpu_custom_call.1} parent=95 // pred_region
          %772 = dma.done %s766, 16
        $region104: #{tpu_custom_call.1} parent=95 // pred_fallthru
          _
        // Predicated region
        $region105: #{tpu_custom_call.1} parent=95 // pred_check
          %p773 = pneg %p146
        $region106: #{tpu_custom_call.1} parent=95 // pred_check_branch
          %775 = sbr.rel (%p773) target = $region108
        $region107: #{tpu_custom_call.1} parent=95 // pred_region
          %776 = dma.done [#allocation7], 16
        $region108: #{tpu_custom_call.1} parent=95 // pred_fallthru
          _
        // Predicated region
        $region109: #{tpu_custom_call.1} parent=95 // pred_check
          %p777 = pneg %p167
        $region110: #{tpu_custom_call.1} parent=95 // pred_check_branch
          %779 = sbr.rel (%p777) target = $region112
        $region111: #{tpu_custom_call.1} parent=95 // pred_region
          %780 = dma.done [#allocation10], 16
        $region112: #{tpu_custom_call.1} parent=95 // pred_fallthru
          _
        %s781 = sand.u32 %s40, 1
        %s782 = scalar_lea.sflag [#allocation4], %s781
        %s783 = sand.u32 %s206, 1
        %s784 = scalar_lea.vmem [#allocation11], %s783
        // Predicated region
        $region113: #{tpu_custom_call.1} parent=95 // pred_check
          %p785 = pneg %p219
        $region114: #{tpu_custom_call.1} parent=95 // pred_check_branch
          %787 = sbr.rel (%p785) target = $region116
        $region115: #{tpu_custom_call.1} parent=95 // pred_region
          %788 = dma.done %s782, 16
        $region116: #{tpu_custom_call.1} parent=95 // pred_fallthru
          _
        %s789 = sand.u32 %s40, 1
        %s790 = scalar_lea.sflag [#allocation7], %s789
        %s791 = sand.u32 %s258, 1
        %s792 = scalar_lea.vmem [#allocation12], %s791
        // Predicated region
        $region117: #{tpu_custom_call.1} parent=95 // pred_check
          %p793 = pneg %p271
        $region118: #{tpu_custom_call.1} parent=95 // pred_check_branch
          %795 = sbr.rel (%p793) target = $region120
        $region119: #{tpu_custom_call.1} parent=95 // pred_region
          %796 = dma.done %s790, 16
        $region120: #{tpu_custom_call.1} parent=95 // pred_fallthru
          _
        %s797 = sand.u32 %s40, 1
        %s798 = scalar_lea.sflag [#allocation4], %s797
        %s799 = sand.u32 %s284, 1
        %s800 = scalar_lea.vmem [#allocation13], %s799
        // Predicated region
        $region121: #{tpu_custom_call.1} parent=95 // pred_check
          %p801 = pneg %p297
        $region122: #{tpu_custom_call.1} parent=95 // pred_check_branch
          %803 = sbr.rel (%p801) target = $region124
        $region123: #{tpu_custom_call.1} parent=95 // pred_region
          %804 = dma.done %s798, 16
        $region124: #{tpu_custom_call.1} parent=95 // pred_fallthru
          _
        %s805 = sand.u32 %s40, 1
        %s806 = scalar_lea.sflag [#allocation4], %s805
        %s807 = sand.u32 %s60, 1
        %s808 = smul.addr %s807, 8
        %s809 = scalar_lea.vmem [#allocation3], %s808
        %p810 = pneg %p73
        %p811 = pneg %p70
        %s812 = sand.u32 %s40, 1
        %s813 = scalar_lea.sflag [#allocation7], %s812
        %s814 = sand.u32 %s86, 1
        %s815 = scalar_lea.vmem [#allocation6], %s814
        %p816 = pneg %p99
        %p817 = pneg %p96
        %p818 = scmp.lt.s32.totalorder %s44, 1
        %s819 = scalar_select %p818, %s44, 1
        %s820 = smul.addr %s819, 8
        %s821 = scalar_lea.vmem %s2, %s820
        %p822 = pneg %p125
        %p823 = pneg %p122
        %p824 = pneg %p146
        %p825 = pneg %p143
        %p826 = pneg %p167
        %p827 = pneg %p164
        %p828 = scmp.lt.s32.totalorder %s45, 1
        %s829 = scalar_select %p828, %s45, 1
        %s830 = smul.addr %s829, 4
        %s831 = smul.addr %s830, 8
        %s832 = scalar_lea.vmem %s5, %s831
        %p833 = pneg %p193
        %p834 = pneg %p190
        %s835 = sand.u32 %s40, 1
        %s836 = scalar_lea.sflag [#allocation4], %s835
        %s837 = sand.u32 %s206, 1
        %s838 = scalar_lea.vmem [#allocation11], %s837
        %p839 = pneg %p219
        %p840 = pneg %p216
        %p841 = scmp.lt.s32.totalorder %s45, 1
        %s842 = scalar_select %p841, %s45, 1
        %s843 = smul.addr %s842, 4
        %s844 = smul.addr %s843, 8
        %s845 = scalar_lea.vmem %s7, %s844
        %p846 = pneg %p245
        %p847 = pneg %p242
        %s848 = sand.u32 %s40, 1
        %s849 = scalar_lea.sflag [#allocation7], %s848
        %s850 = sand.u32 %s258, 1
        %s851 = scalar_lea.vmem [#allocation12], %s850
        %p852 = pneg %p271
        %p853 = pneg %p268
        %s854 = sand.u32 %s40, 1
        %s855 = scalar_lea.sflag [#allocation4], %s854
        %s856 = sand.u32 %s284, 1
        %s857 = scalar_lea.vmem [#allocation13], %s856
        %p858 = pneg %p297
        %p859 = pneg %p294
        %p860 = scmp.lt.s32.totalorder %s45, 1
        %s861 = scalar_select %p860, %s45, 1
        %s862 = scalar_lea.vmem %s10, %s861
        %p863 = pneg %p323
        %p864 = pneg %p320
        %p865 = scmp.lt.s32.totalorder %s45, 1
        %s866 = scalar_select %p865, %s45, 1
        %s867 = smul.addr %s866, 4
        %s868 = smul.addr %s867, 8
        %s869 = scalar_lea.vmem %s11, %s868
        %p870 = pneg %p349
        %p871 = pneg %p346
        %p872 = scmp.lt.s32.totalorder %s45, 1
        %s873 = scalar_select %p872, %s45, 1
        %s874 = scalar_lea.vmem %s12, %s873
        %p875 = pneg %p375
        %p876 = pneg %p372
        %p877 = scmp.lt.s32.totalorder %s45, 1
        %s878 = scalar_select %p877, %s45, 1
        %s879 = smul.addr %s878, 8
        %s880 = smul.addr %s879, 8
        %s881 = scalar_lea.vmem %s13, %s880
        %p882 = pneg %p401
        %p883 = pneg %p398
        %p884 = scmp.lt.s32.totalorder %s45, 1
        %s885 = scalar_select %p884, %s45, 1
        %s886 = scalar_lea.vmem %s14, %s885
        %p887 = pneg %p427
        %p888 = pneg %p424
        %p889 = scmp.lt.s32.totalorder %s45, 1
        %s890 = scalar_select %p889, %s45, 1
        %s891 = scalar_lea.vmem %s15, %s890
        %p892 = pneg %p453
        %p893 = pneg %p450
        %p894 = scmp.lt.s32.totalorder %s45, 1
        %s895 = scalar_select %p894, %s45, 1
        %s896 = scalar_lea.vmem %s16, %s895
        %p897 = pneg %p479
        %p898 = pneg %p476
        %p899 = pneg %p500
        %p900 = pneg %p497
        %p901 = pneg %p521
        %p902 = pneg %p518
        %p903 = pneg %p547
        %p904 = pneg %p544
        %s905 = sand.u32 %s534, 1
        %s906 = scalar_lea.sflag [#allocation5], %s905
        %s907 = sand.u32 %s534, 1
        %s908 = scalar_lea.vmem [#allocation14], %s907
        %p909 = scmp.lt.s32.totalorder %s44, 1
        %s910 = scalar_select %p909, %s44, 1
        %s911 = smul.addr %s910, 8
        %s912 = scalar_lea.vmem %s2, %s911
        %p913 = scmp.lt.s32.totalorder %s45, 1
        %s914 = scalar_select %p913, %s45, 1
        %s915 = smul.addr %s914, 4
        %s916 = smul.addr %s915, 8
        %s917 = scalar_lea.vmem %s5, %s916
        %p918 = scmp.lt.s32.totalorder %s45, 1
        %s919 = scalar_select %p918, %s45, 1
        %s920 = smul.addr %s919, 4
        %s921 = smul.addr %s920, 8
        %s922 = scalar_lea.vmem %s7, %s921
        %p923 = scmp.lt.s32.totalorder %s45, 1
        %s924 = scalar_select %p923, %s45, 1
        %s925 = scalar_lea.vmem %s10, %s924
        %p926 = scmp.lt.s32.totalorder %s45, 1
        %s927 = scalar_select %p926, %s45, 1
        %s928 = smul.addr %s927, 4
        %s929 = smul.addr %s928, 8
        %s930 = scalar_lea.vmem %s11, %s929
        %p931 = scmp.lt.s32.totalorder %s45, 1
        %s932 = scalar_select %p931, %s45, 1
        %s933 = scalar_lea.vmem %s12, %s932
        %p934 = scmp.lt.s32.totalorder %s45, 1
        %s935 = scalar_select %p934, %s45, 1
        %s936 = smul.addr %s935, 8
        %s937 = smul.addr %s936, 8
        %s938 = scalar_lea.vmem %s13, %s937
        %p939 = scmp.lt.s32.totalorder %s45, 1
        %s940 = scalar_select %p939, %s45, 1
        %s941 = scalar_lea.vmem %s14, %s940
        %p942 = scmp.lt.s32.totalorder %s45, 1
        %s943 = scalar_select %p942, %s45, 1
        %s944 = scalar_lea.vmem %s15, %s943
        %p945 = scmp.lt.s32.totalorder %s45, 1
        %s946 = scalar_select %p945, %s45, 1
        %s947 = scalar_lea.vmem %s16, %s946
        %v948 = vld [vmem:[%s912] sm:$0xff]
        %v949 = vld [vmem:[%s768] sm:$0x1]
        %p950 = scmp.eq.s32.totalorder %s45, 0
        // Predicated region
        $region125: #{tpu_custom_call.1} parent=95 // pred_check
          %p951 = pneg %p950
        $region126: #{tpu_custom_call.1} parent=95 // pred_check_branch
          %953 = sbr.rel (%p951) target = $region128
        $region127: #{tpu_custom_call.1} parent=95 // pred_region
          %v954 = vld [vmem:[%s760] sm:$0xff]
          %v955 = vld [vmem:[#allocation8] sm:$0x1]
          %v956 = vld [vmem:[#allocation9] sm:$0x1]
          %vm957 = vcmask 261120
          %v958 = vsel %vm957, %v954, 0.0
          %959 = vadd.xlane.f32.xlu0 %v958
          %v960 = vpop.xlane.xlu0 %959
          %v961 = vrcp.pop 32.0
          %v962 = vmul.f32 %v960, %v961
          %v963 = vsub.f32 %v954, %v962
          %v964 = vmul.f32 %v963, %v963
          %v965 = vsel %vm957, %v964, 0.0
          %966 = vadd.xlane.f32.xlu0 %v965
          %v967 = vpop.xlane.xlu0 %966
          %v968 = vmul.f32 %v967, %v961
          %v969 = vadd.f32 %v968, 1e-12
          %v970 = vrsqrt.pop %v969
          %v971 = vmul.f32 %v963, %v970
          %v973 = vlaneseq
          %v974 = vshrl.u32 %v973, 7
          %v975 = vsub.s32 0, %v974
          %v976 = vrot.slane %v955, %v975
          %v978 = vmul.f32 %v971, %v976
          %v980 = vlaneseq
          %v981 = vshrl.u32 %v980, 7
          %v982 = vsub.s32 0, %v981
          %v983 = vrot.slane %v956, %v982
          %v985 = vadd.f32 %v978, %v983
          %987 = vset.pattern.permute.xlu0 0
          %988 = vperm.xlu0 %987, %v948
          %v989 = vpop.permute.xlu0 %988
          %v991 = vmul.f32 %v985, %v989
          %992 = vst.msk [vmem:[#allocation2] sm:$0xff] %vm957, %v991
        $region128: #{tpu_custom_call.1} parent=95 // pred_fallthru
          _
        %v993 = vld [vmem:[#allocation2] sm:$0xff]
        %v994 = vld [vmem:[%s917] sm:$0xff]
        %v995 = vld [vmem:[%s917 + $0x8] sm:$0xff]
        %v996 = vld [vmem:[%s917 + $0x10] sm:$0xff]
        %v997 = vld [vmem:[%s917 + $0x18] sm:$0xff]
        %v998 = vld [vmem:[%s784] sm:$0x1]
        %v1000 = vlaneseq
        %v1001 = vshrl.u32 %v1000, 7
        %v1002 = vsub.s32 0, %v1001
        %v1003 = vrot.slane %v998, %v1002
        %vm1005 = vcmask 261120
        %v1007 = vsel %vm1005, %v993, 0
        %1009 = vmatprep.subr.mxu0 0.0
        %1010 = vmatpush1.msra.mxu0 0.0
        %1011 = vmatprep.subr.mxu0 0.0
        %1012 = vmatpush1.msra.mxu0 0.0
        %1013 = vmatprep.subr.mxu0 0.0
        %1014 = vmatpush1.msra.mxu0 0.0
        %1015 = vmatprep.subr.mxu0 0.0
        %1016 = vmatpush1.msra.mxu0 0.0
        %1017 = vmatprep.subr.mxu0 0.0
        %1018 = vmatpush1.msra.mxu0 0.0
        %1019 = vmatprep.subr.mxu0 0.0
        %1020 = vmatpush1.msra.mxu0 0.0
        %1021 = vmatprep.subr.mxu0 0.0
        %1022 = vmatpush1.msra.mxu0 0.0
        %1023 = vmatprep.subr.mxu0 0.0
        %1024 = vmatpush1.msra.mxu0 0.0
        %1025 = vmatprep.subr.mxu0 0.0
        %1026 = vmatpush1.msra.mxu0 0.0
        %1027 = vmatprep.subr.mxu0 0.0
        %1028 = vmatpush1.msra.mxu0 0.0
        %1029 = vmatprep.subr.mxu0 0.0
        %1030 = vmatpush1.msra.mxu0 0.0
        %1031 = vmatprep.subr.mxu0 0.0
        %1032 = vmatpush1.msra.mxu0 0.0
        %1033 = vmatprep.subr.mxu0 0.0
        %1034 = vmatpush1.msra.mxu0 %v997
        %1035 = vmatprep.subr.mxu0 0.0
        %1036 = vmatpush1.msra.mxu0 %v996
        %1037 = vmatprep.subr.mxu0 0.0
        %1038 = vmatpush1.msra.mxu0 %v995
        %1039 = vmatprep.subr.mxu0 0.0
        %1040 = vmatpush1.msra.mxu0 %v994
        %1041 = vmatprep.subr.mxu0 0.0
        %1042 = vmatpush2.msra.mxu0 0.0
        %1043 = vmatprep.subr.mxu0 0.0
        %1044 = vmatpush2.msra.mxu0 0.0
        %1045 = vmatprep.subr.mxu0 0.0
        %1046 = vmatpush2.msra.mxu0 0.0
        %1047 = vmatprep.subr.mxu0 0.0
        %1048 = vmatpush2.msra.mxu0 0.0
        %1049 = vmatprep.subr.mxu0 0.0
        %1050 = vmatpush2.msra.mxu0 0.0
        %1051 = vmatprep.subr.mxu0 0.0
        %1052 = vmatpush2.msra.mxu0 0.0
        %1053 = vmatprep.subr.mxu0 0.0
        %1054 = vmatpush2.msra.mxu0 0.0
        %1055 = vmatprep.subr.mxu0 0.0
        %1056 = vmatpush2.msra.mxu0 0.0
        %1057 = vmatprep.subr.mxu0 0.0
        %1058 = vmatpush2.msra.mxu0 0.0
        %1059 = vmatprep.subr.mxu0 0.0
        %1060 = vmatpush2.msra.mxu0 0.0
        %1061 = vmatprep.subr.mxu0 0.0
        %1062 = vmatpush2.msra.mxu0 0.0
        %1063 = vmatprep.subr.mxu0 0.0
        %1064 = vmatpush2.msra.mxu0 0.0
        %1065 = vmatprep.subr.mxu0 0.0
        %1066 = vmatpush2.msra.mxu0 0.0
        %1067 = vmatprep.subr.mxu0 0.0
        %1068 = vmatpush2.msra.mxu0 0.0
        %1069 = vmatprep.subr.mxu0 0.0
        %1070 = vmatpush2.msra.mxu0 0.0
        %1071 = vmatprep.subr.mxu0 0.0
        %1072 = vmatpush2.msra.mxu0 0.0
        %1073 = vmatprep.mubr.f32.mxu0 0.0
        %1074 = vmatmul.mubr.f32.gmra.mxu0 %v1007
        %v1075 = vpop.f32.mrf.mxu0
        %v1076 = vadd.f32 %v1003, %v1075
        %v1077 = vpop.f32.mrf.mxu0
        %1078 = vdwg.mxu0
        %1080 = vrot.lane.b32.xlu0 %v1076, 96
        %v1081 = vpop.permute.xlu0 %1080
        %vm1082 = vcmask 64512
        %v1083 = vsel %vm1082, %v1076, 0
        %v1085 = vsel %vm1082, %v1081, 0
        %1087 = vmatprep.subr.mxu0 0.0
        %1088 = vmatpush1.xpose.msra.mxu0 0.0
        %1089 = vmatprep.subr.mxu0 0.0
        %1090 = vmatpush1.xpose.msra.mxu0 0.0
        %1091 = vmatprep.subr.mxu0 0.0
        %1092 = vmatpush1.xpose.msra.mxu0 0.0
        %1093 = vmatprep.subr.mxu0 0.0
        %1094 = vmatpush1.xpose.msra.mxu0 0.0
        %1095 = vmatprep.subr.mxu0 0.0
        %1096 = vmatpush1.xpose.msra.mxu0 0.0
        %1097 = vmatprep.subr.mxu0 0.0
        %1098 = vmatpush1.xpose.msra.mxu0 0.0
        %1099 = vmatprep.subr.mxu0 0.0
        %1100 = vmatpush1.xpose.msra.mxu0 0.0
        %1101 = vmatprep.subr.mxu0 0.0
        %1102 = vmatpush1.xpose.msra.mxu0 0.0
        %1103 = vmatprep.subr.mxu0 0.0
        %1104 = vmatpush1.xpose.msra.mxu0 0.0
        %1105 = vmatprep.subr.mxu0 0.0
        %1106 = vmatpush1.xpose.msra.mxu0 0.0
        %1107 = vmatprep.subr.mxu0 0.0
        %1108 = vmatpush1.xpose.msra.mxu0 0.0
        %1109 = vmatprep.subr.mxu0 0.0
        %1110 = vmatpush1.xpose.msra.mxu0 0.0
        %1111 = vmatprep.subr.mxu0 0.0
        %1112 = vmatpush1.xpose.msra.mxu0 0.0
        %1113 = vmatprep.subr.mxu0 0.0
        %1114 = vmatpush1.xpose.msra.mxu0 0.0
        %1115 = vmatprep.subr.mxu0 0.0
        %1116 = vmatpush1.xpose.msra.mxu0 0.0
        %1117 = vmatprep.subr.mxu0 0.0
        %1118 = vmatpush1.xpose.msra.mxu0 %v1085
        %1119 = vmatprep.subr.mxu0 0.0
        %1120 = vmatpush2.xpose.msra.mxu0 0.0
        %1121 = vmatprep.subr.mxu0 0.0
        %1122 = vmatpush2.xpose.msra.mxu0 0.0
        %1123 = vmatprep.subr.mxu0 0.0
        %1124 = vmatpush2.xpose.msra.mxu0 0.0
        %1125 = vmatprep.subr.mxu0 0.0
        %1126 = vmatpush2.xpose.msra.mxu0 0.0
        %1127 = vmatprep.subr.mxu0 0.0
        %1128 = vmatpush2.xpose.msra.mxu0 0.0
        %1129 = vmatprep.subr.mxu0 0.0
        %1130 = vmatpush2.xpose.msra.mxu0 0.0
        %1131 = vmatprep.subr.mxu0 0.0
        %1132 = vmatpush2.xpose.msra.mxu0 0.0
        %1133 = vmatprep.subr.mxu0 0.0
        %1134 = vmatpush2.xpose.msra.mxu0 0.0
        %1135 = vmatprep.subr.mxu0 0.0
        %1136 = vmatpush2.xpose.msra.mxu0 0.0
        %1137 = vmatprep.subr.mxu0 0.0
        %1138 = vmatpush2.xpose.msra.mxu0 0.0
        %1139 = vmatprep.subr.mxu0 0.0
        %1140 = vmatpush2.xpose.msra.mxu0 0.0
        %1141 = vmatprep.subr.mxu0 0.0
        %1142 = vmatpush2.xpose.msra.mxu0 0.0
        %1143 = vmatprep.subr.mxu0 0.0
        %1144 = vmatpush2.xpose.msra.mxu0 0.0
        %1145 = vmatprep.subr.mxu0 0.0
        %1146 = vmatpush2.xpose.msra.mxu0 0.0
        %1147 = vmatprep.subr.mxu0 0.0
        %1148 = vmatpush2.xpose.msra.mxu0 0.0
        %1149 = vmatprep.subr.mxu0 0.0
        %1150 = vmatpush2.xpose.msra.mxu0 0.0
        %1151 = vmatprep.mubr.f32.mxu0 0.0
        %1152 = vmatmul.mubr.f32.gmra.mxu0 %v1083
        %v1153 = vpop.f32.mrf.mxu0
        %v1154 = vadd.f32 0.0, %v1153
        %v1155 = vpop.f32.mrf.mxu0
        %1156 = vdwg.mxu0
        %v1157 = vmul.f32 %v1154, 0.35355338
        %v1159 = vlaneseq
        %v1160 = vshrl.u32 %v1159, 7
        %v1161 = vsub.s32 0, %v1160
        %v1162 = vrot.slane %v949, %v1161
        %v1164 = vadd.f32 %v1157, %v1162
        %v1165 = vsel %vm1082, %v1164, -inf
        %1166 = vmax.xlane.f32.xlu0 %v1165
        %v1167 = vpop.xlane.xlu0 %1166
        %v1168 = vsub.f32 %v1164, %v1167
        %v1169 = vmul.f32 %v1168, 1.442695
        %v1170 = vpow.pop %v1169
        %v1171 = vsel %vm1082, %v1170, 0.0
        %1172 = vadd.xlane.f32.xlu0 %v1171
        %v1173 = vpop.xlane.xlu0 %1172
        %v1174 = vrcp.pop %v1173
        %v1175 = vmul.f32 %v1170, %v1174
        %1176 = vrot.lane.b32.xlu0 %v1076, 64
        %v1177 = vpop.permute.xlu0 %1176
        %v1180 = vsel %vm1082, %v1175, 0
        %1182 = vmatprep.subr.mxu0 0.0
        %1183 = vmatpush1.msra.mxu0 0.0
        %1184 = vmatprep.subr.mxu0 0.0
        %1185 = vmatpush1.msra.mxu0 0.0
        %1186 = vmatprep.subr.mxu0 0.0
        %1187 = vmatpush1.msra.mxu0 0.0
        %1188 = vmatprep.subr.mxu0 0.0
        %1189 = vmatpush1.msra.mxu0 0.0
        %1190 = vmatprep.subr.mxu0 0.0
        %1191 = vmatpush1.msra.mxu0 0.0
        %1192 = vmatprep.subr.mxu0 0.0
        %1193 = vmatpush1.msra.mxu0 0.0
        %1194 = vmatprep.subr.mxu0 0.0
        %1195 = vmatpush1.msra.mxu0 0.0
        %1196 = vmatprep.subr.mxu0 0.0
        %1197 = vmatpush1.msra.mxu0 0.0
        %1198 = vmatprep.subr.mxu0 0.0
        %1199 = vmatpush1.msra.mxu0 0.0
        %1200 = vmatprep.subr.mxu0 0.0
        %1201 = vmatpush1.msra.mxu0 0.0
        %1202 = vmatprep.subr.mxu0 0.0
        %1203 = vmatpush1.msra.mxu0 0.0
        %1204 = vmatprep.subr.mxu0 0.0
        %1205 = vmatpush1.msra.mxu0 0.0
        %1206 = vmatprep.subr.mxu0 0.0
        %1207 = vmatpush1.msra.mxu0 0.0
        %1208 = vmatprep.subr.mxu0 0.0
        %1209 = vmatpush1.msra.mxu0 0.0
        %1210 = vmatprep.subr.mxu0 0.0
        %1211 = vmatpush1.msra.mxu0 0.0
        %1212 = vmatprep.subr.mxu0 0.0
        %1213 = vmatpush1.msra.mxu0 %v1177
        %1214 = vmatprep.subr.mxu0 0.0
        %1215 = vmatpush2.msra.mxu0 0.0
        %1216 = vmatprep.subr.mxu0 0.0
        %1217 = vmatpush2.msra.mxu0 0.0
        %1218 = vmatprep.subr.mxu0 0.0
        %1219 = vmatpush2.msra.mxu0 0.0
        %1220 = vmatprep.subr.mxu0 0.0
        %1221 = vmatpush2.msra.mxu0 0.0
        %1222 = vmatprep.subr.mxu0 0.0
        %1223 = vmatpush2.msra.mxu0 0.0
        %1224 = vmatprep.subr.mxu0 0.0
        %1225 = vmatpush2.msra.mxu0 0.0
        %1226 = vmatprep.subr.mxu0 0.0
        %1227 = vmatpush2.msra.mxu0 0.0
        %1228 = vmatprep.subr.mxu0 0.0
        %1229 = vmatpush2.msra.mxu0 0.0
        %1230 = vmatprep.subr.mxu0 0.0
        %1231 = vmatpush2.msra.mxu0 0.0
        %1232 = vmatprep.subr.mxu0 0.0
        %1233 = vmatpush2.msra.mxu0 0.0
        %1234 = vmatprep.subr.mxu0 0.0
        %1235 = vmatpush2.msra.mxu0 0.0
        %1236 = vmatprep.subr.mxu0 0.0
        %1237 = vmatpush2.msra.mxu0 0.0
        %1238 = vmatprep.subr.mxu0 0.0
        %1239 = vmatpush2.msra.mxu0 0.0
        %1240 = vmatprep.subr.mxu0 0.0
        %1241 = vmatpush2.msra.mxu0 0.0
        %1242 = vmatprep.subr.mxu0 0.0
        %1243 = vmatpush2.msra.mxu0 0.0
        %1244 = vmatprep.subr.mxu0 0.0
        %1245 = vmatpush2.msra.mxu0 0.0
        %1246 = vmatprep.mubr.f32.mxu0 0.0
        %1247 = vmatmul.mubr.f32.gmra.mxu0 %v1180
        %v1248 = vpop.f32.mrf.mxu0
        %v1249 = vadd.f32 0.0, %v1248
        %v1250 = vpop.f32.mrf.mxu0
        %1251 = vdwg.mxu0
        %1252 = vrot.lane.b32.xlu0 %v1076, 120
        %v1253 = vpop.permute.xlu0 %1252
        %1254 = vrot.lane.b32.xlu0 %v1076, 88
        %v1255 = vpop.permute.xlu0 %1254
        %v1256 = vsel %vm1082, %v1253, 0
        %v1258 = vsel %vm1082, %v1255, 0
        %1260 = vmatprep.subr.mxu0 0.0
        %1261 = vmatpush1.xpose.msra.mxu0 0.0
        %1262 = vmatprep.subr.mxu0 0.0
        %1263 = vmatpush1.xpose.msra.mxu0 0.0
        %1264 = vmatprep.subr.mxu0 0.0
        %1265 = vmatpush1.xpose.msra.mxu0 0.0
        %1266 = vmatprep.subr.mxu0 0.0
        %1267 = vmatpush1.xpose.msra.mxu0 0.0
        %1268 = vmatprep.subr.mxu0 0.0
        %1269 = vmatpush1.xpose.msra.mxu0 0.0
        %1270 = vmatprep.subr.mxu0 0.0
        %1271 = vmatpush1.xpose.msra.mxu0 0.0
        %1272 = vmatprep.subr.mxu0 0.0
        %1273 = vmatpush1.xpose.msra.mxu0 0.0
        %1274 = vmatprep.subr.mxu0 0.0
        %1275 = vmatpush1.xpose.msra.mxu0 0.0
        %1276 = vmatprep.subr.mxu0 0.0
        %1277 = vmatpush1.xpose.msra.mxu0 0.0
        %1278 = vmatprep.subr.mxu0 0.0
        %1279 = vmatpush1.xpose.msra.mxu0 0.0
        %1280 = vmatprep.subr.mxu0 0.0
        %1281 = vmatpush1.xpose.msra.mxu0 0.0
        %1282 = vmatprep.subr.mxu0 0.0
        %1283 = vmatpush1.xpose.msra.mxu0 0.0
        %1284 = vmatprep.subr.mxu0 0.0
        %1285 = vmatpush1.xpose.msra.mxu0 0.0
        %1286 = vmatprep.subr.mxu0 0.0
        %1287 = vmatpush1.xpose.msra.mxu0 0.0
        %1288 = vmatprep.subr.mxu0 0.0
        %1289 = vmatpush1.xpose.msra.mxu0 0.0
        %1290 = vmatprep.subr.mxu0 0.0
        %1291 = vmatpush1.xpose.msra.mxu0 %v1258
        %1292 = vmatprep.subr.mxu0 0.0
        %1293 = vmatpush2.xpose.msra.mxu0 0.0
        %1294 = vmatprep.subr.mxu0 0.0
        %1295 = vmatpush2.xpose.msra.mxu0 0.0
        %1296 = vmatprep.subr.mxu0 0.0
        %1297 = vmatpush2.xpose.msra.mxu0 0.0
        %1298 = vmatprep.subr.mxu0 0.0
        %1299 = vmatpush2.xpose.msra.mxu0 0.0
        %1300 = vmatprep.subr.mxu0 0.0
        %1301 = vmatpush2.xpose.msra.mxu0 0.0
        %1302 = vmatprep.subr.mxu0 0.0
        %1303 = vmatpush2.xpose.msra.mxu0 0.0
        %1304 = vmatprep.subr.mxu0 0.0
        %1305 = vmatpush2.xpose.msra.mxu0 0.0
        %1306 = vmatprep.subr.mxu0 0.0
        %1307 = vmatpush2.xpose.msra.mxu0 0.0
        %1308 = vmatprep.subr.mxu0 0.0
        %1309 = vmatpush2.xpose.msra.mxu0 0.0
        %1310 = vmatprep.subr.mxu0 0.0
        %1311 = vmatpush2.xpose.msra.mxu0 0.0
        %1312 = vmatprep.subr.mxu0 0.0
        %1313 = vmatpush2.xpose.msra.mxu0 0.0
        %1314 = vmatprep.subr.mxu0 0.0
        %1315 = vmatpush2.xpose.msra.mxu0 0.0
        %1316 = vmatprep.subr.mxu0 0.0
        %1317 = vmatpush2.xpose.msra.mxu0 0.0
        %1318 = vmatprep.subr.mxu0 0.0
        %1319 = vmatpush2.xpose.msra.mxu0 0.0
        %1320 = vmatprep.subr.mxu0 0.0
        %1321 = vmatpush2.xpose.msra.mxu0 0.0
        %1322 = vmatprep.subr.mxu0 0.0
        %1323 = vmatpush2.xpose.msra.mxu0 0.0
        %1324 = vmatprep.mubr.f32.mxu0 0.0
        %1325 = vmatmul.mubr.f32.gmra.mxu0 %v1256
        %v1326 = vpop.f32.mrf.mxu0
        %v1327 = vadd.f32 0.0, %v1326
        %v1328 = vpop.f32.mrf.mxu0
        %1329 = vdwg.mxu0
        %v1330 = vmul.f32 %v1327, 0.35355338
        %v1331 = vadd.f32 %v1330, %v1162
        %v1332 = vsel %vm1082, %v1331, -inf
        %1333 = vmax.xlane.f32.xlu0 %v1332
        %v1334 = vpop.xlane.xlu0 %1333
        %v1335 = vsub.f32 %v1331, %v1334
        %v1336 = vmul.f32 %v1335, 1.442695
        %v1337 = vpow.pop %v1336
        %v1338 = vsel %vm1082, %v1337, 0.0
        %1339 = vadd.xlane.f32.xlu0 %v1338
        %v1340 = vpop.xlane.xlu0 %1339
        %v1341 = vrcp.pop %v1340
        %v1342 = vmul.f32 %v1337, %v1341
        %1343 = vrot.lane.b32.xlu0 %v1076, 56
        %v1344 = vpop.permute.xlu0 %1343
        %v1347 = vsel %vm1082, %v1342, 0
        %1349 = vmatprep.subr.mxu0 0.0
        %1350 = vmatpush1.msra.mxu0 0.0
        %1351 = vmatprep.subr.mxu0 0.0
        %1352 = vmatpush1.msra.mxu0 0.0
        %1353 = vmatprep.subr.mxu0 0.0
        %1354 = vmatpush1.msra.mxu0 0.0
        %1355 = vmatprep.subr.mxu0 0.0
        %1356 = vmatpush1.msra.mxu0 0.0
        %1357 = vmatprep.subr.mxu0 0.0
        %1358 = vmatpush1.msra.mxu0 0.0
        %1359 = vmatprep.subr.mxu0 0.0
        %1360 = vmatpush1.msra.mxu0 0.0
        %1361 = vmatprep.subr.mxu0 0.0
        %1362 = vmatpush1.msra.mxu0 0.0
        %1363 = vmatprep.subr.mxu0 0.0
        %1364 = vmatpush1.msra.mxu0 0.0
        %1365 = vmatprep.subr.mxu0 0.0
        %1366 = vmatpush1.msra.mxu0 0.0
        %1367 = vmatprep.subr.mxu0 0.0
        %1368 = vmatpush1.msra.mxu0 0.0
        %1369 = vmatprep.subr.mxu0 0.0
        %1370 = vmatpush1.msra.mxu0 0.0
        %1371 = vmatprep.subr.mxu0 0.0
        %1372 = vmatpush1.msra.mxu0 0.0
        %1373 = vmatprep.subr.mxu0 0.0
        %1374 = vmatpush1.msra.mxu0 0.0
        %1375 = vmatprep.subr.mxu0 0.0
        %1376 = vmatpush1.msra.mxu0 0.0
        %1377 = vmatprep.subr.mxu0 0.0
        %1378 = vmatpush1.msra.mxu0 0.0
        %1379 = vmatprep.subr.mxu0 0.0
        %1380 = vmatpush1.msra.mxu0 %v1344
        %1381 = vmatprep.subr.mxu0 0.0
        %1382 = vmatpush2.msra.mxu0 0.0
        %1383 = vmatprep.subr.mxu0 0.0
        %1384 = vmatpush2.msra.mxu0 0.0
        %1385 = vmatprep.subr.mxu0 0.0
        %1386 = vmatpush2.msra.mxu0 0.0
        %1387 = vmatprep.subr.mxu0 0.0
        %1388 = vmatpush2.msra.mxu0 0.0
        %1389 = vmatprep.subr.mxu0 0.0
        %1390 = vmatpush2.msra.mxu0 0.0
        %1391 = vmatprep.subr.mxu0 0.0
        %1392 = vmatpush2.msra.mxu0 0.0
        %1393 = vmatprep.subr.mxu0 0.0
        %1394 = vmatpush2.msra.mxu0 0.0
        %1395 = vmatprep.subr.mxu0 0.0
        %1396 = vmatpush2.msra.mxu0 0.0
        %1397 = vmatprep.subr.mxu0 0.0
        %1398 = vmatpush2.msra.mxu0 0.0
        %1399 = vmatprep.subr.mxu0 0.0
        %1400 = vmatpush2.msra.mxu0 0.0
        %1401 = vmatprep.subr.mxu0 0.0
        %1402 = vmatpush2.msra.mxu0 0.0
        %1403 = vmatprep.subr.mxu0 0.0
        %1404 = vmatpush2.msra.mxu0 0.0
        %1405 = vmatprep.subr.mxu0 0.0
        %1406 = vmatpush2.msra.mxu0 0.0
        %1407 = vmatprep.subr.mxu0 0.0
        %1408 = vmatpush2.msra.mxu0 0.0
        %1409 = vmatprep.subr.mxu0 0.0
        %1410 = vmatpush2.msra.mxu0 0.0
        %1411 = vmatprep.subr.mxu0 0.0
        %1412 = vmatpush2.msra.mxu0 0.0
        %1413 = vmatprep.mubr.f32.mxu0 0.0
        %1414 = vmatmul.mubr.f32.gmra.mxu0 %v1347
        %v1415 = vpop.f32.mrf.mxu0
        %v1416 = vadd.f32 0.0, %v1415
        %v1417 = vpop.f32.mrf.mxu0
        %1418 = vdwg.mxu0
        %1419 = vrot.lane.b32.xlu0 %v1076, 112
        %v1420 = vpop.permute.xlu0 %1419
        %1421 = vrot.lane.b32.xlu0 %v1076, 80
        %v1422 = vpop.permute.xlu0 %1421
        %v1423 = vsel %vm1082, %v1420, 0
        %v1425 = vsel %vm1082, %v1422, 0
        %1427 = vmatprep.subr.mxu0 0.0
        %1428 = vmatpush1.xpose.msra.mxu0 0.0
        %1429 = vmatprep.subr.mxu0 0.0
        %1430 = vmatpush1.xpose.msra.mxu0 0.0
        %1431 = vmatprep.subr.mxu0 0.0
        %1432 = vmatpush1.xpose.msra.mxu0 0.0
        %1433 = vmatprep.subr.mxu0 0.0
        %1434 = vmatpush1.xpose.msra.mxu0 0.0
        %1435 = vmatprep.subr.mxu0 0.0
        %1436 = vmatpush1.xpose.msra.mxu0 0.0
        %1437 = vmatprep.subr.mxu0 0.0
        %1438 = vmatpush1.xpose.msra.mxu0 0.0
        %1439 = vmatprep.subr.mxu0 0.0
        %1440 = vmatpush1.xpose.msra.mxu0 0.0
        %1441 = vmatprep.subr.mxu0 0.0
        %1442 = vmatpush1.xpose.msra.mxu0 0.0
        %1443 = vmatprep.subr.mxu0 0.0
        %1444 = vmatpush1.xpose.msra.mxu0 0.0
        %1445 = vmatprep.subr.mxu0 0.0
        %1446 = vmatpush1.xpose.msra.mxu0 0.0
        %1447 = vmatprep.subr.mxu0 0.0
        %1448 = vmatpush1.xpose.msra.mxu0 0.0
        %1449 = vmatprep.subr.mxu0 0.0
        %1450 = vmatpush1.xpose.msra.mxu0 0.0
        %1451 = vmatprep.subr.mxu0 0.0
        %1452 = vmatpush1.xpose.msra.mxu0 0.0
        %1453 = vmatprep.subr.mxu0 0.0
        %1454 = vmatpush1.xpose.msra.mxu0 0.0
        %1455 = vmatprep.subr.mxu0 0.0
        %1456 = vmatpush1.xpose.msra.mxu0 0.0
        %1457 = vmatprep.subr.mxu0 0.0
        %1458 = vmatpush1.xpose.msra.mxu0 %v1425
        %1459 = vmatprep.subr.mxu0 0.0
        %1460 = vmatpush2.xpose.msra.mxu0 0.0
        %1461 = vmatprep.subr.mxu0 0.0
        %1462 = vmatpush2.xpose.msra.mxu0 0.0
        %1463 = vmatprep.subr.mxu0 0.0
        %1464 = vmatpush2.xpose.msra.mxu0 0.0
        %1465 = vmatprep.subr.mxu0 0.0
        %1466 = vmatpush2.xpose.msra.mxu0 0.0
        %1467 = vmatprep.subr.mxu0 0.0
        %1468 = vmatpush2.xpose.msra.mxu0 0.0
        %1469 = vmatprep.subr.mxu0 0.0
        %1470 = vmatpush2.xpose.msra.mxu0 0.0
        %1471 = vmatprep.subr.mxu0 0.0
        %1472 = vmatpush2.xpose.msra.mxu0 0.0
        %1473 = vmatprep.subr.mxu0 0.0
        %1474 = vmatpush2.xpose.msra.mxu0 0.0
        %1475 = vmatprep.subr.mxu0 0.0
        %1476 = vmatpush2.xpose.msra.mxu0 0.0
        %1477 = vmatprep.subr.mxu0 0.0
        %1478 = vmatpush2.xpose.msra.mxu0 0.0
        %1479 = vmatprep.subr.mxu0 0.0
        %1480 = vmatpush2.xpose.msra.mxu0 0.0
        %1481 = vmatprep.subr.mxu0 0.0
        %1482 = vmatpush2.xpose.msra.mxu0 0.0
        %1483 = vmatprep.subr.mxu0 0.0
        %1484 = vmatpush2.xpose.msra.mxu0 0.0
        %1485 = vmatprep.subr.mxu0 0.0
        %1486 = vmatpush2.xpose.msra.mxu0 0.0
        %1487 = vmatprep.subr.mxu0 0.0
        %1488 = vmatpush2.xpose.msra.mxu0 0.0
        %1489 = vmatprep.subr.mxu0 0.0
        %1490 = vmatpush2.xpose.msra.mxu0 0.0
        %1491 = vmatprep.mubr.f32.mxu0 0.0
        %1492 = vmatmul.mubr.f32.gmra.mxu0 %v1423
        %v1493 = vpop.f32.mrf.mxu0
        %v1494 = vadd.f32 0.0, %v1493
        %v1495 = vpop.f32.mrf.mxu0
        %1496 = vdwg.mxu0
        %v1497 = vmul.f32 %v1494, 0.35355338
        %v1498 = vadd.f32 %v1497, %v1162
        %v1499 = vsel %vm1082, %v1498, -inf
        %1500 = vmax.xlane.f32.xlu0 %v1499
        %v1501 = vpop.xlane.xlu0 %1500
        %v1502 = vsub.f32 %v1498, %v1501
        %v1503 = vmul.f32 %v1502, 1.442695
        %v1504 = vpow.pop %v1503
        %v1505 = vsel %vm1082, %v1504, 0.0
        %1506 = vadd.xlane.f32.xlu0 %v1505
        %v1507 = vpop.xlane.xlu0 %1506
        %v1508 = vrcp.pop %v1507
        %v1509 = vmul.f32 %v1504, %v1508
        %1510 = vrot.lane.b32.xlu0 %v1076, 48
        %v1511 = vpop.permute.xlu0 %1510
        %v1514 = vsel %vm1082, %v1509, 0
        %1516 = vmatprep.subr.mxu0 0.0
        %1517 = vmatpush1.msra.mxu0 0.0
        %1518 = vmatprep.subr.mxu0 0.0
        %1519 = vmatpush1.msra.mxu0 0.0
        %1520 = vmatprep.subr.mxu0 0.0
        %1521 = vmatpush1.msra.mxu0 0.0
        %1522 = vmatprep.subr.mxu0 0.0
        %1523 = vmatpush1.msra.mxu0 0.0
        %1524 = vmatprep.subr.mxu0 0.0
        %1525 = vmatpush1.msra.mxu0 0.0
        %1526 = vmatprep.subr.mxu0 0.0
        %1527 = vmatpush1.msra.mxu0 0.0
        %1528 = vmatprep.subr.mxu0 0.0
        %1529 = vmatpush1.msra.mxu0 0.0
        %1530 = vmatprep.subr.mxu0 0.0
        %1531 = vmatpush1.msra.mxu0 0.0
        %1532 = vmatprep.subr.mxu0 0.0
        %1533 = vmatpush1.msra.mxu0 0.0
        %1534 = vmatprep.subr.mxu0 0.0
        %1535 = vmatpush1.msra.mxu0 0.0
        %1536 = vmatprep.subr.mxu0 0.0
        %1537 = vmatpush1.msra.mxu0 0.0
        %1538 = vmatprep.subr.mxu0 0.0
        %1539 = vmatpush1.msra.mxu0 0.0
        %1540 = vmatprep.subr.mxu0 0.0
        %1541 = vmatpush1.msra.mxu0 0.0
        %1542 = vmatprep.subr.mxu0 0.0
        %1543 = vmatpush1.msra.mxu0 0.0
        %1544 = vmatprep.subr.mxu0 0.0
        %1545 = vmatpush1.msra.mxu0 0.0
        %1546 = vmatprep.subr.mxu0 0.0
        %1547 = vmatpush1.msra.mxu0 %v1511
        %1548 = vmatprep.subr.mxu0 0.0
        %1549 = vmatpush2.msra.mxu0 0.0
        %1550 = vmatprep.subr.mxu0 0.0
        %1551 = vmatpush2.msra.mxu0 0.0
        %1552 = vmatprep.subr.mxu0 0.0
        %1553 = vmatpush2.msra.mxu0 0.0
        %1554 = vmatprep.subr.mxu0 0.0
        %1555 = vmatpush2.msra.mxu0 0.0
        %1556 = vmatprep.subr.mxu0 0.0
        %1557 = vmatpush2.msra.mxu0 0.0
        %1558 = vmatprep.subr.mxu0 0.0
        %1559 = vmatpush2.msra.mxu0 0.0
        %1560 = vmatprep.subr.mxu0 0.0
        %1561 = vmatpush2.msra.mxu0 0.0
        %1562 = vmatprep.subr.mxu0 0.0
        %1563 = vmatpush2.msra.mxu0 0.0
        %1564 = vmatprep.subr.mxu0 0.0
        %1565 = vmatpush2.msra.mxu0 0.0
        %1566 = vmatprep.subr.mxu0 0.0
        %1567 = vmatpush2.msra.mxu0 0.0
        %1568 = vmatprep.subr.mxu0 0.0
        %1569 = vmatpush2.msra.mxu0 0.0
        %1570 = vmatprep.subr.mxu0 0.0
        %1571 = vmatpush2.msra.mxu0 0.0
        %1572 = vmatprep.subr.mxu0 0.0
        %1573 = vmatpush2.msra.mxu0 0.0
        %1574 = vmatprep.subr.mxu0 0.0
        %1575 = vmatpush2.msra.mxu0 0.0
        %1576 = vmatprep.subr.mxu0 0.0
        %1577 = vmatpush2.msra.mxu0 0.0
        %1578 = vmatprep.subr.mxu0 0.0
        %1579 = vmatpush2.msra.mxu0 0.0
        %1580 = vmatprep.mubr.f32.mxu0 0.0
        %1581 = vmatmul.mubr.f32.gmra.mxu0 %v1514
        %v1582 = vpop.f32.mrf.mxu0
        %v1583 = vadd.f32 0.0, %v1582
        %v1584 = vpop.f32.mrf.mxu0
        %1585 = vdwg.mxu0
        %1586 = vrot.lane.b32.xlu0 %v1076, 104
        %v1587 = vpop.permute.xlu0 %1586
        %1588 = vrot.lane.b32.xlu0 %v1076, 72
        %v1589 = vpop.permute.xlu0 %1588
        %v1590 = vsel %vm1082, %v1587, 0
        %v1592 = vsel %vm1082, %v1589, 0
        %1594 = vmatprep.subr.mxu0 0.0
        %1595 = vmatpush1.xpose.msra.mxu0 0.0
        %1596 = vmatprep.subr.mxu0 0.0
        %1597 = vmatpush1.xpose.msra.mxu0 0.0
        %1598 = vmatprep.subr.mxu0 0.0
        %1599 = vmatpush1.xpose.msra.mxu0 0.0
        %1600 = vmatprep.subr.mxu0 0.0
        %1601 = vmatpush1.xpose.msra.mxu0 0.0
        %1602 = vmatprep.subr.mxu0 0.0
        %1603 = vmatpush1.xpose.msra.mxu0 0.0
        %1604 = vmatprep.subr.mxu0 0.0
        %1605 = vmatpush1.xpose.msra.mxu0 0.0
        %1606 = vmatprep.subr.mxu0 0.0
        %1607 = vmatpush1.xpose.msra.mxu0 0.0
        %1608 = vmatprep.subr.mxu0 0.0
        %1609 = vmatpush1.xpose.msra.mxu0 0.0
        %1610 = vmatprep.subr.mxu0 0.0
        %1611 = vmatpush1.xpose.msra.mxu0 0.0
        %1612 = vmatprep.subr.mxu0 0.0
        %1613 = vmatpush1.xpose.msra.mxu0 0.0
        %1614 = vmatprep.subr.mxu0 0.0
        %1615 = vmatpush1.xpose.msra.mxu0 0.0
        %1616 = vmatprep.subr.mxu0 0.0
        %1617 = vmatpush1.xpose.msra.mxu0 0.0
        %1618 = vmatprep.subr.mxu0 0.0
        %1619 = vmatpush1.xpose.msra.mxu0 0.0
        %1620 = vmatprep.subr.mxu0 0.0
        %1621 = vmatpush1.xpose.msra.mxu0 0.0
        %1622 = vmatprep.subr.mxu0 0.0
        %1623 = vmatpush1.xpose.msra.mxu0 0.0
        %1624 = vmatprep.subr.mxu0 0.0
        %1625 = vmatpush1.xpose.msra.mxu0 %v1592
        %1626 = vmatprep.subr.mxu0 0.0
        %1627 = vmatpush2.xpose.msra.mxu0 0.0
        %1628 = vmatprep.subr.mxu0 0.0
        %1629 = vmatpush2.xpose.msra.mxu0 0.0
        %1630 = vmatprep.subr.mxu0 0.0
        %1631 = vmatpush2.xpose.msra.mxu0 0.0
        %1632 = vmatprep.subr.mxu0 0.0
        %1633 = vmatpush2.xpose.msra.mxu0 0.0
        %1634 = vmatprep.subr.mxu0 0.0
        %1635 = vmatpush2.xpose.msra.mxu0 0.0
        %1636 = vmatprep.subr.mxu0 0.0
        %1637 = vmatpush2.xpose.msra.mxu0 0.0
        %1638 = vmatprep.subr.mxu0 0.0
        %1639 = vmatpush2.xpose.msra.mxu0 0.0
        %1640 = vmatprep.subr.mxu0 0.0
        %1641 = vmatpush2.xpose.msra.mxu0 0.0
        %1642 = vmatprep.subr.mxu0 0.0
        %1643 = vmatpush2.xpose.msra.mxu0 0.0
        %1644 = vmatprep.subr.mxu0 0.0
        %1645 = vmatpush2.xpose.msra.mxu0 0.0
        %1646 = vmatprep.subr.mxu0 0.0
        %1647 = vmatpush2.xpose.msra.mxu0 0.0
        %1648 = vmatprep.subr.mxu0 0.0
        %1649 = vmatpush2.xpose.msra.mxu0 0.0
        %1650 = vmatprep.subr.mxu0 0.0
        %1651 = vmatpush2.xpose.msra.mxu0 0.0
        %1652 = vmatprep.subr.mxu0 0.0
        %1653 = vmatpush2.xpose.msra.mxu0 0.0
        %1654 = vmatprep.subr.mxu0 0.0
        %1655 = vmatpush2.xpose.msra.mxu0 0.0
        %1656 = vmatprep.subr.mxu0 0.0
        %1657 = vmatpush2.xpose.msra.mxu0 0.0
        %1658 = vmatprep.mubr.f32.mxu0 0.0
        %1659 = vmatmul.mubr.f32.gmra.mxu0 %v1590
        %v1660 = vpop.f32.mrf.mxu0
        %v1661 = vadd.f32 0.0, %v1660
        %v1662 = vpop.f32.mrf.mxu0
        %1663 = vdwg.mxu0
        %v1664 = vmul.f32 %v1661, 0.35355338
        %v1665 = vadd.f32 %v1664, %v1162
        %v1666 = vsel %vm1082, %v1665, -inf
        %1667 = vmax.xlane.f32.xlu0 %v1666
        %v1668 = vpop.xlane.xlu0 %1667
        %v1669 = vsub.f32 %v1665, %v1668
        %v1670 = vmul.f32 %v1669, 1.442695
        %v1671 = vpow.pop %v1670
        %v1672 = vsel %vm1082, %v1671, 0.0
        %1673 = vadd.xlane.f32.xlu0 %v1672
        %v1674 = vpop.xlane.xlu0 %1673
        %v1675 = vrcp.pop %v1674
        %v1676 = vmul.f32 %v1671, %v1675
        %1677 = vrot.lane.b32.xlu0 %v1076, 40
        %v1678 = vpop.permute.xlu0 %1677
        %v1681 = vsel %vm1082, %v1676, 0
        %1683 = vmatprep.subr.mxu0 0.0
        %1684 = vmatpush1.msra.mxu0 0.0
        %1685 = vmatprep.subr.mxu0 0.0
        %1686 = vmatpush1.msra.mxu0 0.0
        %1687 = vmatprep.subr.mxu0 0.0
        %1688 = vmatpush1.msra.mxu0 0.0
        %1689 = vmatprep.subr.mxu0 0.0
        %1690 = vmatpush1.msra.mxu0 0.0
        %1691 = vmatprep.subr.mxu0 0.0
        %1692 = vmatpush1.msra.mxu0 0.0
        %1693 = vmatprep.subr.mxu0 0.0
        %1694 = vmatpush1.msra.mxu0 0.0
        %1695 = vmatprep.subr.mxu0 0.0
        %1696 = vmatpush1.msra.mxu0 0.0
        %1697 = vmatprep.subr.mxu0 0.0
        %1698 = vmatpush1.msra.mxu0 0.0
        %1699 = vmatprep.subr.mxu0 0.0
        %1700 = vmatpush1.msra.mxu0 0.0
        %1701 = vmatprep.subr.mxu0 0.0
        %1702 = vmatpush1.msra.mxu0 0.0
        %1703 = vmatprep.subr.mxu0 0.0
        %1704 = vmatpush1.msra.mxu0 0.0
        %1705 = vmatprep.subr.mxu0 0.0
        %1706 = vmatpush1.msra.mxu0 0.0
        %1707 = vmatprep.subr.mxu0 0.0
        %1708 = vmatpush1.msra.mxu0 0.0
        %1709 = vmatprep.subr.mxu0 0.0
        %1710 = vmatpush1.msra.mxu0 0.0
        %1711 = vmatprep.subr.mxu0 0.0
        %1712 = vmatpush1.msra.mxu0 0.0
        %1713 = vmatprep.subr.mxu0 0.0
        %1714 = vmatpush1.msra.mxu0 %v1678
        %1715 = vmatprep.subr.mxu0 0.0
        %1716 = vmatpush2.msra.mxu0 0.0
        %1717 = vmatprep.subr.mxu0 0.0
        %1718 = vmatpush2.msra.mxu0 0.0
        %1719 = vmatprep.subr.mxu0 0.0
        %1720 = vmatpush2.msra.mxu0 0.0
        %1721 = vmatprep.subr.mxu0 0.0
        %1722 = vmatpush2.msra.mxu0 0.0
        %1723 = vmatprep.subr.mxu0 0.0
        %1724 = vmatpush2.msra.mxu0 0.0
        %1725 = vmatprep.subr.mxu0 0.0
        %1726 = vmatpush2.msra.mxu0 0.0
        %1727 = vmatprep.subr.mxu0 0.0
        %1728 = vmatpush2.msra.mxu0 0.0
        %1729 = vmatprep.subr.mxu0 0.0
        %1730 = vmatpush2.msra.mxu0 0.0
        %1731 = vmatprep.subr.mxu0 0.0
        %1732 = vmatpush2.msra.mxu0 0.0
        %1733 = vmatprep.subr.mxu0 0.0
        %1734 = vmatpush2.msra.mxu0 0.0
        %1735 = vmatprep.subr.mxu0 0.0
        %1736 = vmatpush2.msra.mxu0 0.0
        %1737 = vmatprep.subr.mxu0 0.0
        %1738 = vmatpush2.msra.mxu0 0.0
        %1739 = vmatprep.subr.mxu0 0.0
        %1740 = vmatpush2.msra.mxu0 0.0
        %1741 = vmatprep.subr.mxu0 0.0
        %1742 = vmatpush2.msra.mxu0 0.0
        %1743 = vmatprep.subr.mxu0 0.0
        %1744 = vmatpush2.msra.mxu0 0.0
        %1745 = vmatprep.subr.mxu0 0.0
        %1746 = vmatpush2.msra.mxu0 0.0
        %1747 = vmatprep.mubr.f32.mxu0 0.0
        %1748 = vmatmul.mubr.f32.gmra.mxu0 %v1681
        %v1749 = vpop.f32.mrf.mxu0
        %v1750 = vadd.f32 0.0, %v1749
        %v1751 = vpop.f32.mrf.mxu0
        %1752 = vdwg.mxu0
        %1754 = vrot.lane.b32.xlu0 %v1416, 8
        %v1755 = vpop.permute.xlu0 %1754
        %1758 = vrot.lane.b32.xlu0 %v1583, 16
        %v1759 = vpop.permute.xlu0 %1758
        %1762 = vrot.lane.b32.xlu0 %v1750, 24
        %v1763 = vpop.permute.xlu0 %1762
        %v1765 = vsel %vm1082, %v1249, %v1755
        %vm1766 = vcmask 130048
        %v1767 = vsel %vm1766, %v1765, %v1759
        %vm1768 = vcmask 195584
        %v1769 = vsel %vm1768, %v1767, %v1763
        %v1770 = vld [vmem:[%s922] sm:$0xff]
        %v1771 = vld [vmem:[%s922 + $0x8] sm:$0xff]
        %v1772 = vld [vmem:[%s922 + $0x10] sm:$0xff]
        %v1773 = vld [vmem:[%s922 + $0x18] sm:$0xff]
        %v1774 = vld [vmem:[%s792] sm:$0x1]
        %v1776 = vlaneseq
        %v1777 = vshrl.u32 %v1776, 7
        %v1778 = vsub.s32 0, %v1777
        %v1779 = vrot.slane %v1774, %v1778
        %v1782 = vsel %vm1005, %v1769, 0
        %1784 = vmatprep.subr.mxu0 0.0
        %1785 = vmatpush1.msra.mxu0 0.0
        %1786 = vmatprep.subr.mxu0 0.0
        %1787 = vmatpush1.msra.mxu0 0.0
        %1788 = vmatprep.subr.mxu0 0.0
        %1789 = vmatpush1.msra.mxu0 0.0
        %1790 = vmatprep.subr.mxu0 0.0
        %1791 = vmatpush1.msra.mxu0 0.0
        %1792 = vmatprep.subr.mxu0 0.0
        %1793 = vmatpush1.msra.mxu0 0.0
        %1794 = vmatprep.subr.mxu0 0.0
        %1795 = vmatpush1.msra.mxu0 0.0
        %1796 = vmatprep.subr.mxu0 0.0
        %1797 = vmatpush1.msra.mxu0 0.0
        %1798 = vmatprep.subr.mxu0 0.0
        %1799 = vmatpush1.msra.mxu0 0.0
        %1800 = vmatprep.subr.mxu0 0.0
        %1801 = vmatpush1.msra.mxu0 0.0
        %1802 = vmatprep.subr.mxu0 0.0
        %1803 = vmatpush1.msra.mxu0 0.0
        %1804 = vmatprep.subr.mxu0 0.0
        %1805 = vmatpush1.msra.mxu0 0.0
        %1806 = vmatprep.subr.mxu0 0.0
        %1807 = vmatpush1.msra.mxu0 0.0
        %1808 = vmatprep.subr.mxu0 0.0
        %1809 = vmatpush1.msra.mxu0 %v1773
        %1810 = vmatprep.subr.mxu0 0.0
        %1811 = vmatpush1.msra.mxu0 %v1772
        %1812 = vmatprep.subr.mxu0 0.0
        %1813 = vmatpush1.msra.mxu0 %v1771
        %1814 = vmatprep.subr.mxu0 0.0
        %1815 = vmatpush1.msra.mxu0 %v1770
        %1816 = vmatprep.subr.mxu0 0.0
        %1817 = vmatpush2.msra.mxu0 0.0
        %1818 = vmatprep.subr.mxu0 0.0
        %1819 = vmatpush2.msra.mxu0 0.0
        %1820 = vmatprep.subr.mxu0 0.0
        %1821 = vmatpush2.msra.mxu0 0.0
        %1822 = vmatprep.subr.mxu0 0.0
        %1823 = vmatpush2.msra.mxu0 0.0
        %1824 = vmatprep.subr.mxu0 0.0
        %1825 = vmatpush2.msra.mxu0 0.0
        %1826 = vmatprep.subr.mxu0 0.0
        %1827 = vmatpush2.msra.mxu0 0.0
        %1828 = vmatprep.subr.mxu0 0.0
        %1829 = vmatpush2.msra.mxu0 0.0
        %1830 = vmatprep.subr.mxu0 0.0
        %1831 = vmatpush2.msra.mxu0 0.0
        %1832 = vmatprep.subr.mxu0 0.0
        %1833 = vmatpush2.msra.mxu0 0.0
        %1834 = vmatprep.subr.mxu0 0.0
        %1835 = vmatpush2.msra.mxu0 0.0
        %1836 = vmatprep.subr.mxu0 0.0
        %1837 = vmatpush2.msra.mxu0 0.0
        %1838 = vmatprep.subr.mxu0 0.0
        %1839 = vmatpush2.msra.mxu0 0.0
        %1840 = vmatprep.subr.mxu0 0.0
        %1841 = vmatpush2.msra.mxu0 0.0
        %1842 = vmatprep.subr.mxu0 0.0
        %1843 = vmatpush2.msra.mxu0 0.0
        %1844 = vmatprep.subr.mxu0 0.0
        %1845 = vmatpush2.msra.mxu0 0.0
        %1846 = vmatprep.subr.mxu0 0.0
        %1847 = vmatpush2.msra.mxu0 0.0
        %1848 = vmatprep.mubr.f32.mxu0 0.0
        %1849 = vmatmul.mubr.f32.gmra.mxu0 %v1782
        %v1850 = vpop.f32.mrf.mxu0
        %v1851 = vadd.f32 %v1779, %v1850
        %v1852 = vpop.f32.mrf.mxu0
        %1853 = vdwg.mxu0
        %v1854 = vadd.f32 %v993, %v1851
        %v1855 = vld [vmem:[%s800] sm:$0x1]
        %v1856 = vld [vmem:[%s925] sm:$0x1]
        %v1857 = vsel %vm1005, %v1854, 0.0
        %1858 = vadd.xlane.f32.xlu0 %v1857
        %v1859 = vpop.xlane.xlu0 %1858
        %v1860 = vrcp.pop 32.0
        %v1861 = vmul.f32 %v1859, %v1860
        %v1862 = vsub.f32 %v1854, %v1861
        %v1863 = vmul.f32 %v1862, %v1862
        %v1864 = vsel %vm1005, %v1863, 0.0
        %1865 = vadd.xlane.f32.xlu0 %v1864
        %v1866 = vpop.xlane.xlu0 %1865
        %v1867 = vmul.f32 %v1866, %v1860
        %v1868 = vadd.f32 %v1867, 1e-12
        %v1869 = vrsqrt.pop %v1868
        %v1870 = vmul.f32 %v1862, %v1869
        %v1872 = vlaneseq
        %v1873 = vshrl.u32 %v1872, 7
        %v1874 = vsub.s32 0, %v1873
        %v1875 = vrot.slane %v1855, %v1874
        %v1877 = vmul.f32 %v1870, %v1875
        %v1879 = vlaneseq
        %v1880 = vshrl.u32 %v1879, 7
        %v1881 = vsub.s32 0, %v1880
        %v1882 = vrot.slane %v1856, %v1881
        %v1884 = vadd.f32 %v1877, %v1882
        %v1885 = vld [vmem:[%s930] sm:$0xff]
        %v1886 = vld [vmem:[%s930 + $0x8] sm:$0xff]
        %v1887 = vld [vmem:[%s930 + $0x10] sm:$0xff]
        %v1888 = vld [vmem:[%s930 + $0x18] sm:$0xff]
        %v1889 = vld [vmem:[%s933] sm:$0x1]
        %v1891 = vlaneseq
        %v1892 = vshrl.u32 %v1891, 7
        %v1893 = vsub.s32 0, %v1892
        %v1894 = vrot.slane %v1889, %v1893
        %v1897 = vsel %vm1005, %v1884, 0
        %1899 = vmatprep.subr.mxu0 0.0
        %1900 = vmatpush1.msra.mxu0 0.0
        %1901 = vmatprep.subr.mxu0 0.0
        %1902 = vmatpush1.msra.mxu0 0.0
        %1903 = vmatprep.subr.mxu0 0.0
        %1904 = vmatpush1.msra.mxu0 0.0
        %1905 = vmatprep.subr.mxu0 0.0
        %1906 = vmatpush1.msra.mxu0 0.0
        %1907 = vmatprep.subr.mxu0 0.0
        %1908 = vmatpush1.msra.mxu0 0.0
        %1909 = vmatprep.subr.mxu0 0.0
        %1910 = vmatpush1.msra.mxu0 0.0
        %1911 = vmatprep.subr.mxu0 0.0
        %1912 = vmatpush1.msra.mxu0 0.0
        %1913 = vmatprep.subr.mxu0 0.0
        %1914 = vmatpush1.msra.mxu0 0.0
        %1915 = vmatprep.subr.mxu0 0.0
        %1916 = vmatpush1.msra.mxu0 0.0
        %1917 = vmatprep.subr.mxu0 0.0
        %1918 = vmatpush1.msra.mxu0 0.0
        %1919 = vmatprep.subr.mxu0 0.0
        %1920 = vmatpush1.msra.mxu0 0.0
        %1921 = vmatprep.subr.mxu0 0.0
        %1922 = vmatpush1.msra.mxu0 0.0
        %1923 = vmatprep.subr.mxu0 0.0
        %1924 = vmatpush1.msra.mxu0 %v1888
        %1925 = vmatprep.subr.mxu0 0.0
        %1926 = vmatpush1.msra.mxu0 %v1887
        %1927 = vmatprep.subr.mxu0 0.0
        %1928 = vmatpush1.msra.mxu0 %v1886
        %1929 = vmatprep.subr.mxu0 0.0
        %1930 = vmatpush1.msra.mxu0 %v1885
        %1931 = vmatprep.subr.mxu0 0.0
        %1932 = vmatpush2.msra.mxu0 0.0
        %1933 = vmatprep.subr.mxu0 0.0
        %1934 = vmatpush2.msra.mxu0 0.0
        %1935 = vmatprep.subr.mxu0 0.0
        %1936 = vmatpush2.msra.mxu0 0.0
        %1937 = vmatprep.subr.mxu0 0.0
        %1938 = vmatpush2.msra.mxu0 0.0
        %1939 = vmatprep.subr.mxu0 0.0
        %1940 = vmatpush2.msra.mxu0 0.0
        %1941 = vmatprep.subr.mxu0 0.0
        %1942 = vmatpush2.msra.mxu0 0.0
        %1943 = vmatprep.subr.mxu0 0.0
        %1944 = vmatpush2.msra.mxu0 0.0
        %1945 = vmatprep.subr.mxu0 0.0
        %1946 = vmatpush2.msra.mxu0 0.0
        %1947 = vmatprep.subr.mxu0 0.0
        %1948 = vmatpush2.msra.mxu0 0.0
        %1949 = vmatprep.subr.mxu0 0.0
        %1950 = vmatpush2.msra.mxu0 0.0
        %1951 = vmatprep.subr.mxu0 0.0
        %1952 = vmatpush2.msra.mxu0 0.0
        %1953 = vmatprep.subr.mxu0 0.0
        %1954 = vmatpush2.msra.mxu0 0.0
        %1955 = vmatprep.subr.mxu0 0.0
        %1956 = vmatpush2.msra.mxu0 0.0
        %1957 = vmatprep.subr.mxu0 0.0
        %1958 = vmatpush2.msra.mxu0 0.0
        %1959 = vmatprep.subr.mxu0 0.0
        %1960 = vmatpush2.msra.mxu0 0.0
        %1961 = vmatprep.subr.mxu0 0.0
        %1962 = vmatpush2.msra.mxu0 0.0
        %1963 = vmatprep.mubr.f32.mxu0 0.0
        %1964 = vmatmul.mubr.f32.gmra.mxu0 %v1897
        %v1965 = vpop.f32.mrf.mxu0
        %v1966 = vadd.f32 %v1894, %v1965
        %v1967 = vpop.f32.mrf.mxu0
        %1968 = vdwg.mxu0
        %v1969 = vmul.f32 %v1966, 0.5
        %v1970 = vmul.f32 %v1966, 0.044715
        %v1971 = vmul.f32 %v1970, %v1966
        %v1972 = vmul.f32 %v1971, %v1966
        %v1973 = vadd.f32 %v1966, %v1972
        %v1974 = vmul.f32 %v1973, 0.7978846
        %v1975 = vtanh.pop %v1974
        %v1976 = vadd.f32 %v1975, 1.0
        %v1977 = vmul.f32 %v1969, %v1976
        %v1978 = vld [vmem:[%s938] sm:$0xff]
        %v1979 = vld [vmem:[%s938 + $0x8] sm:$0xff]
        %v1980 = vld [vmem:[%s938 + $0x10] sm:$0xff]
        %v1981 = vld [vmem:[%s938 + $0x18] sm:$0xff]
        %v1982 = vld [vmem:[%s938 + $0x20] sm:$0xff]
        %v1983 = vld [vmem:[%s938 + $0x28] sm:$0xff]
        %v1984 = vld [vmem:[%s938 + $0x30] sm:$0xff]
        %v1985 = vld [vmem:[%s938 + $0x38] sm:$0xff]
        %v1986 = vld [vmem:[%s941] sm:$0x1]
        %v1988 = vlaneseq
        %v1989 = vshrl.u32 %v1988, 7
        %v1990 = vsub.s32 0, %v1989
        %v1991 = vrot.slane %v1986, %v1990
        %vm1993 = vcmask 523264
        %v1995 = vsel %vm1993, %v1977, 0
        %1997 = vmatprep.subr.mxu0 0.0
        %1998 = vmatpush1.msra.mxu0 0.0
        %1999 = vmatprep.subr.mxu0 0.0
        %2000 = vmatpush1.msra.mxu0 0.0
        %2001 = vmatprep.subr.mxu0 0.0
        %2002 = vmatpush1.msra.mxu0 0.0
        %2003 = vmatprep.subr.mxu0 0.0
        %2004 = vmatpush1.msra.mxu0 0.0
        %2005 = vmatprep.subr.mxu0 0.0
        %2006 = vmatpush1.msra.mxu0 0.0
        %2007 = vmatprep.subr.mxu0 0.0
        %2008 = vmatpush1.msra.mxu0 0.0
        %2009 = vmatprep.subr.mxu0 0.0
        %2010 = vmatpush1.msra.mxu0 0.0
        %2011 = vmatprep.subr.mxu0 0.0
        %2012 = vmatpush1.msra.mxu0 0.0
        %2013 = vmatprep.subr.mxu0 0.0
        %2014 = vmatpush1.msra.mxu0 %v1985
        %2015 = vmatprep.subr.mxu0 0.0
        %2016 = vmatpush1.msra.mxu0 %v1984
        %2017 = vmatprep.subr.mxu0 0.0
        %2018 = vmatpush1.msra.mxu0 %v1983
        %2019 = vmatprep.subr.mxu0 0.0
        %2020 = vmatpush1.msra.mxu0 %v1982
        %2021 = vmatprep.subr.mxu0 0.0
        %2022 = vmatpush1.msra.mxu0 %v1981
        %2023 = vmatprep.subr.mxu0 0.0
        %2024 = vmatpush1.msra.mxu0 %v1980
        %2025 = vmatprep.subr.mxu0 0.0
        %2026 = vmatpush1.msra.mxu0 %v1979
        %2027 = vmatprep.subr.mxu0 0.0
        %2028 = vmatpush1.msra.mxu0 %v1978
        %2029 = vmatprep.subr.mxu0 0.0
        %2030 = vmatpush2.msra.mxu0 0.0
        %2031 = vmatprep.subr.mxu0 0.0
        %2032 = vmatpush2.msra.mxu0 0.0
        %2033 = vmatprep.subr.mxu0 0.0
        %2034 = vmatpush2.msra.mxu0 0.0
        %2035 = vmatprep.subr.mxu0 0.0
        %2036 = vmatpush2.msra.mxu0 0.0
        %2037 = vmatprep.subr.mxu0 0.0
        %2038 = vmatpush2.msra.mxu0 0.0
        %2039 = vmatprep.subr.mxu0 0.0
        %2040 = vmatpush2.msra.mxu0 0.0
        %2041 = vmatprep.subr.mxu0 0.0
        %2042 = vmatpush2.msra.mxu0 0.0
        %2043 = vmatprep.subr.mxu0 0.0
        %2044 = vmatpush2.msra.mxu0 0.0
        %2045 = vmatprep.subr.mxu0 0.0
        %2046 = vmatpush2.msra.mxu0 0.0
        %2047 = vmatprep.subr.mxu0 0.0
        %2048 = vmatpush2.msra.mxu0 0.0
        %2049 = vmatprep.subr.mxu0 0.0
        %2050 = vmatpush2.msra.mxu0 0.0
        %2051 = vmatprep.subr.mxu0 0.0
        %2052 = vmatpush2.msra.mxu0 0.0
        %2053 = vmatprep.subr.mxu0 0.0
        %2054 = vmatpush2.msra.mxu0 0.0
        %2055 = vmatprep.subr.mxu0 0.0
        %2056 = vmatpush2.msra.mxu0 0.0
        %2057 = vmatprep.subr.mxu0 0.0
        %2058 = vmatpush2.msra.mxu0 0.0
        %2059 = vmatprep.subr.mxu0 0.0
        %2060 = vmatpush2.msra.mxu0 0.0
        %2061 = vmatprep.mubr.f32.mxu0 0.0
        %2062 = vmatmul.mubr.f32.gmra.mxu0 %v1995
        %v2063 = vpop.f32.mrf.mxu0
        %v2064 = vadd.f32 %v1991, %v2063
        %v2065 = vpop.f32.mrf.mxu0
        %2066 = vdwg.mxu0
        %v2067 = vadd.f32 %v1884, %v2064
        %v2068 = vld [vmem:[%s944] sm:$0x1]
        %v2069 = vld [vmem:[%s947] sm:$0x1]
        %v2070 = vsel %vm1005, %v2067, 0.0
        %2071 = vadd.xlane.f32.xlu0 %v2070
        %v2072 = vpop.xlane.xlu0 %2071
        %v2073 = vmul.f32 %v2072, %v1860
        %v2074 = vsub.f32 %v2067, %v2073
        %v2075 = vmul.f32 %v2074, %v2074
        %v2076 = vsel %vm1005, %v2075, 0.0
        %2077 = vadd.xlane.f32.xlu0 %v2076
        %v2078 = vpop.xlane.xlu0 %2077
        %v2079 = vmul.f32 %v2078, %v1860
        %v2080 = vadd.f32 %v2079, 1e-12
        %v2081 = vrsqrt.pop %v2080
        %v2082 = vmul.f32 %v2074, %v2081
        %v2084 = vlaneseq
        %v2085 = vshrl.u32 %v2084, 7
        %v2086 = vsub.s32 0, %v2085
        %v2087 = vrot.slane %v2068, %v2086
        %v2089 = vmul.f32 %v2082, %v2087
        %v2091 = vlaneseq
        %v2092 = vshrl.u32 %v2091, 7
        %v2093 = vsub.s32 0, %v2092
        %v2094 = vrot.slane %v2069, %v2093
        %v2096 = vadd.f32 %v2089, %v2094
        %2098 = vset.pattern.permute.xlu0 0
        %2099 = vperm.xlu0 %2098, %v948
        %v2100 = vpop.permute.xlu0 %2099
        %v2102 = vmul.f32 %v2096, %v2100
        %2103 = vst.msk [vmem:[#allocation2] sm:$0xff] %vm1005, %v2102
        %p2104 = scmp.eq.s32.totalorder %s45, 1
        // Predicated region
        $region129: #{tpu_custom_call.1} parent=95 // pred_check
          %p2105 = pneg %p2104
        $region130: #{tpu_custom_call.1} parent=95 // pred_check_branch
          %2107 = sbr.rel (%p2105) target = $region132
        $region131: #{tpu_custom_call.1} parent=95 // pred_region
          %v2108 = vld [vmem:[#allocation2] sm:$0xff]
          %v2109 = vsel %vm1005, %v2108, 0.0
          %v2110 = vrot.slane %v2109, 4
          %v2111 = vadd.f32 %v2109, %v2110
          %v2112 = vrot.slane %v2111, 2
          %v2113 = vadd.f32 %v2111, %v2112
          %v2114 = vrot.slane %v2113, 1
          %v2115 = vadd.f32 %v2113, %v2114
          %v2116 = vrcp.pop 8.0
          %v2117 = vmul.f32 %v2115, %v2116
          %v2118 = vld [vmem:[%s17] sm:$0xff]
          %v2119 = vld [vmem:[%s17 + $0x8] sm:$0xff]
          %v2120 = vld [vmem:[%s17 + $0x10] sm:$0xff]
          %v2121 = vld [vmem:[%s17 + $0x18] sm:$0xff]
          %v2122 = vld [vmem:[%s18] sm:$0x1]
          %v2124 = vsel %vm1005, %v2117, 0
          %2126 = vmatprep.subr.mxu0 0.0
          %2127 = vmatpush1.msra.mxu0 0.0
          %2128 = vmatprep.subr.mxu0 0.0
          %2129 = vmatpush1.msra.mxu0 0.0
          %2130 = vmatprep.subr.mxu0 0.0
          %2131 = vmatpush1.msra.mxu0 0.0
          %2132 = vmatprep.subr.mxu0 0.0
          %2133 = vmatpush1.msra.mxu0 0.0
          %2134 = vmatprep.subr.mxu0 0.0
          %2135 = vmatpush1.msra.mxu0 0.0
          %2136 = vmatprep.subr.mxu0 0.0
          %2137 = vmatpush1.msra.mxu0 0.0
          %2138 = vmatprep.subr.mxu0 0.0
          %2139 = vmatpush1.msra.mxu0 0.0
          %2140 = vmatprep.subr.mxu0 0.0
          %2141 = vmatpush1.msra.mxu0 0.0
          %2142 = vmatprep.subr.mxu0 0.0
          %2143 = vmatpush1.msra.mxu0 0.0
          %2144 = vmatprep.subr.mxu0 0.0
          %2145 = vmatpush1.msra.mxu0 0.0
          %2146 = vmatprep.subr.mxu0 0.0
          %2147 = vmatpush1.msra.mxu0 0.0
          %2148 = vmatprep.subr.mxu0 0.0
          %2149 = vmatpush1.msra.mxu0 0.0
          %2150 = vmatprep.subr.mxu0 0.0
          %2151 = vmatpush1.msra.mxu0 %v2121
          %2152 = vmatprep.subr.mxu0 0.0
          %2153 = vmatpush1.msra.mxu0 %v2120
          %2154 = vmatprep.subr.mxu0 0.0
          %2155 = vmatpush1.msra.mxu0 %v2119
          %2156 = vmatprep.subr.mxu0 0.0
          %2157 = vmatpush1.msra.mxu0 %v2118
          %2158 = vmatprep.subr.mxu0 0.0
          %2159 = vmatpush2.msra.mxu0 0.0
          %2160 = vmatprep.subr.mxu0 0.0
          %2161 = vmatpush2.msra.mxu0 0.0
          %2162 = vmatprep.subr.mxu0 0.0
          %2163 = vmatpush2.msra.mxu0 0.0
          %2164 = vmatprep.subr.mxu0 0.0
          %2165 = vmatpush2.msra.mxu0 0.0
          %2166 = vmatprep.subr.mxu0 0.0
          %2167 = vmatpush2.msra.mxu0 0.0
          %2168 = vmatprep.subr.mxu0 0.0
          %2169 = vmatpush2.msra.mxu0 0.0
          %2170 = vmatprep.subr.mxu0 0.0
          %2171 = vmatpush2.msra.mxu0 0.0
          %2172 = vmatprep.subr.mxu0 0.0
          %2173 = vmatpush2.msra.mxu0 0.0
          %2174 = vmatprep.subr.mxu0 0.0
          %2175 = vmatpush2.msra.mxu0 0.0
          %2176 = vmatprep.subr.mxu0 0.0
          %2177 = vmatpush2.msra.mxu0 0.0
          %2178 = vmatprep.subr.mxu0 0.0
          %2179 = vmatpush2.msra.mxu0 0.0
          %2180 = vmatprep.subr.mxu0 0.0
          %2181 = vmatpush2.msra.mxu0 0.0
          %2182 = vmatprep.subr.mxu0 0.0
          %2183 = vmatpush2.msra.mxu0 0.0
          %2184 = vmatprep.subr.mxu0 0.0
          %2185 = vmatpush2.msra.mxu0 0.0
          %2186 = vmatprep.subr.mxu0 0.0
          %2187 = vmatpush2.msra.mxu0 0.0
          %2188 = vmatprep.subr.mxu0 0.0
          %2189 = vmatpush2.msra.mxu0 0.0
          %2190 = vmatprep.mubr.f32.mxu0 0.0
          %2191 = vmatmul.mubr.f32.gmra.mxu0 %v2124
          %v2192 = vpop.f32.mrf.mxu0
          %v2193 = vadd.f32 %v2122, %v2192
          %v2194 = vpop.f32.mrf.mxu0
          %2195 = vdwg.mxu0
          %2196 = vst [vmem:[%s908] sm:$0x1] %v2193
        $region132: #{tpu_custom_call.1} parent=95 // pred_fallthru
          _
        %s2197 = sand.u32 %s534, 1
        %s2198 = scalar_lea.sflag [#allocation5], %s2197
        %s2199 = sand.u32 %s534, 1
        %s2200 = scalar_lea.vmem [#allocation14], %s2199
        // Predicated region
        $region133: #{tpu_custom_call.1} parent=95 // pred_check
          %p2201 = pneg %p544
        $region134: #{tpu_custom_call.1} parent=95 // pred_check_branch
          %2203 = sbr.rel (%p2201) target = $region136
        $region135: #{tpu_custom_call.1} parent=95 // pred_region
          %s2205 = ssub.s32 16, 16
          %2206 = vsyncadd %s2198, %s2205
          %s2207 = smul.addr %s44, 16
          %s2208 = scalar_lea.hbm %s19, %s2207
          %s2210 = sshll.u32 %s2200, 4
          %s2211 = int_to_ptr.vmem [resolvable:$true] %s2210
          %2213 = dma.vmem_to_hbm [thread:$0]  %s2211, 16, %s2208, %s2198
        $region136: #{tpu_custom_call.1} parent=95 // pred_fallthru
          _
      $region96: #{tpu_custom_call.1} parent=5 // pred_fallthru
        _
      %p2214 = scmp.le.s32.totalorder 2, %s35
      // Predicated region
      $region137: #{tpu_custom_call.1} parent=5 // pred_check
        %p2215 = pneg %p2214
      $region138: #{tpu_custom_call.1} parent=5 // pred_check_branch
        %2217 = sbr.rel (%p2215) target = $region140
      $region139: #{tpu_custom_call.1} parent=5 // pred_region
        %s2218 = ssub.s32 %s35, 2
        // Predicated region
        $region141: #{tpu_custom_call.1} parent=139 // pred_check
          %p2219 = pneg %p550
        $region142: #{tpu_custom_call.1} parent=139 // pred_check_branch
          %2221 = sbr.rel (%p2219) target = $region144
        $region143: #{tpu_custom_call.1} parent=139 // pred_region
          %s2222 = sand.u32 %s535, 1
          %s2223 = scalar_lea.sflag [#allocation5], %s2222
          %s2224 = sand.u32 %s535, 1
          %s2225 = scalar_lea.vmem [#allocation14], %s2224
          %2226 = dma.done %s2223, 16
        $region144: #{tpu_custom_call.1} parent=139 // pred_fallthru
          _
      $region140: #{tpu_custom_call.1} parent=5 // pred_fallthru
        _
    $region6: #{tpu_custom_call.1} parent=1 // loop_footer
      %s39 = sadd.s32 1, %s35
    $region7: #{tpu_custom_call.1} parent=1 // loop_footer_branch
      %34 = sbr.rel target = $region3
    $region8: #{tpu_custom_call.1} parent=1 // loop_exit
      _
    %2227 = vsyncpa [#allocation4], 1
    %s2228 = scalar_lea.sflag [#allocation4], 1
    %2229 = vsyncpa %s2228, 1
    %2230 = vsyncpa [#allocation7], 1
    %s2231 = scalar_lea.sflag [#allocation7], 1
    %2232 = vsyncpa %s2231, 1
    %2233 = vsyncpa [#allocation10], 1
    %2234 = vsyncpa [#allocation5], 1
    %s2235 = scalar_lea.sflag [#allocation5], 1
    %2236 = vsyncpa %s2235, 1

</llo_original>
